<compile_context>
chip_gen: v7x
topology: tpu7x:2x2x1
jax: 0.10.0
libtpu: 0.0.40
codegen_flags: <defaults>
</compile_context>

<pallas_src>
import math
import jax
import jax.numpy as jnp
from jax.experimental import pallas as pl
from jax.experimental.pallas import tpu as pltpu


def lstm_recurrence_kernel(u_ref, wh_ref, out_ref, h_scr, c_scr):
    """One grid step == TB fused LSTM timesteps for one batch block.

    u_ref  : (TB, NB, 4Hp) bf16  precomputed x@Wx + b (h0@Wh folded into t=0)
    wh_ref : (Hp, 4Hp)     bf16  recurrent weights, resident across the grid
    out_ref: (TB, NB, Hp)        hidden states for this time block
    h_scr / c_scr : (NB, Hp) f32 recurrent state carried across the time axis
    """
    Hp = h_scr.shape[-1]
    TB = u_ref.shape[0]

    # Grid axis 1 is the (sequential) time axis: re-init the carried state at
    # the start of every batch block's time sweep.  h0's contribution is
    # already folded into u[0] by the wrapper, c0 is zero.
    @pl.when(pl.program_id(1) == 0)
    def _():
        h_scr[...] = jnp.zeros_like(h_scr)
        c_scr[...] = jnp.zeros_like(c_scr)

    wh = wh_ref[...]          # bf16, stays in vregs / VMEM for the whole block
    h = h_scr[...]            # f32 carried state
    c = c_scr[...]

    # TB is a small static block size: full unroll keeps every index static and
    # lets the scheduler see the whole block (amortizes grid-step overhead).
    for tt in range(TB):
        # Only the recurrent half of the projection sits on the serial path.
        # bf16 x bf16 -> f32 accumulate on the MXU.
        a = u_ref[tt].astype(jnp.float32) + jnp.dot(
            h.astype(wh.dtype), wh, preferred_element_type=jnp.float32)

        # Gate order in this module is [i | f | o | g]: one fused sigmoid over
        # the first 3*Hp lanes, one tanh over the last Hp.  All slices are
        # lane-aligned because Hp is a multiple of 128.
        ifo = jax.nn.sigmoid(a[:, : 3 * Hp])
        g = jnp.tanh(a[:, 3 * Hp:])
        i_g = ifo[:, :Hp]
        f_g = ifo[:, Hp:2 * Hp]
        o_g = ifo[:, 2 * Hp:]

        c = f_g * c + i_g * g
        h = o_g * jnp.tanh(c)
        out_ref[tt] = h.astype(out_ref.dtype)   # lane-dense (NB, Hp) store

    h_scr[...] = h
    c_scr[...] = c


def _round_up(v, m):
    return (v + m - 1) // m * m


def _pad_gate_cols(w, H, Hp):
    """Gate-major zero padding of the last (4H) dim to 4*Hp: [i|f|o|g] blocks."""
    parts = []
    for g in range(4):
        blk = w[..., g * H:(g + 1) * H]
        pad = [(0, 0)] * (blk.ndim - 1) + [(0, Hp - H)]
        parts.append(jnp.pad(blk, pad))
    return jnp.concatenate(parts, axis=-1)


def lstm_forward(x, h0, Wx, Wh, b, *, time_block=8, batch_block=None,
                 mxu_dtype=jnp.bfloat16):
    """x: (N, T, D), h0: (N, H) -> hn: (N, T, H). Initial cell state is zero."""
    N, T, D = x.shape
    H = h0.shape[-1]
    out_dtype = x.dtype

    # Lane-align the hidden dim (lane-aligned gate slices, unmasked output
    # stores) and sublane-align the batch.
    Hp = _round_up(H, 128)
    Np = _round_up(N, 8)

    # Time-block size: largest divisor of T not exceeding time_block.
    TB = max(1, min(time_block, T))
    while T % TB:
        TB -= 1

    # Batch-block size (leading "parallel" grid axis; set to Np//2 on v7x to
    # use both TensorCores).  Must divide Np and be a sublane multiple.
    NB = batch_block if batch_block else Np
    if Np % NB or NB % 8:
        NB = Np

    # ---- Parameter / input padding (gate-major, zero-padded) ---------------
    Wx_p = _pad_gate_cols(Wx, H, Hp)                                    # (D, 4Hp)
    Wh_p = _pad_gate_cols(jnp.pad(Wh, ((0, Hp - H), (0, 0))), H, Hp)    # (Hp, 4Hp)
    b_p = _pad_gate_cols(b, H, Hp)                                      # (4Hp,)
    x_p = jnp.pad(x, ((0, Np - N), (0, 0), (0, 0)))                     # (Np, T, D)
    h0_p = jnp.pad(h0, ((0, Np - N), (0, Hp - H)))                      # (Np, Hp)

    # ---- Hoisted input projection (off the sequential critical path) -------
    # One big lane-dense MXU matmul with M = T*Np rows; bias and h0 @ Wh are
    # folded in so the kernel needs neither Wx, b nor h0.  u is streamed to
    # the kernel in bf16 (halves the HBM round-trip).
    x_tm = jnp.swapaxes(x_p, 0, 1).reshape(T * Np, D)                   # time-major
    u = (x_tm.astype(jnp.float32) @ Wx_p.astype(jnp.float32)
         + b_p.astype(jnp.float32)).reshape(T, Np, 4 * Hp)
    u = u.at[0].add(h0_p.astype(jnp.float32) @ Wh_p.astype(jnp.float32))
    u = u.astype(mxu_dtype)

    out_tmajor = pl.pallas_call(
        lstm_recurrence_kernel,
        out_shape=jax.ShapeDtypeStruct((T, Np, Hp), out_dtype),
        grid_spec=pltpu.PrefetchScalarGridSpec(
            num_scalar_prefetch=0,
            grid=(Np // NB, T // TB),                     # (batch blocks, time blocks)
            in_specs=[
                pl.BlockSpec((TB, NB, 4 * Hp), lambda nb, t: (t, nb, 0)),  # u block
                pl.BlockSpec((Hp, 4 * Hp), lambda nb, t: (0, 0)),          # Wh resident
            ],
            out_specs=pl.BlockSpec((TB, NB, Hp), lambda nb, t: (t, nb, 0)),
            scratch_shapes=[
                pltpu.VMEM((NB, Hp), jnp.float32),   # h_{t-1} (f32)
                pltpu.VMEM((NB, Hp), jnp.float32),   # c_{t-1} (f32)
            ],
        ),
        compiler_params=pltpu.CompilerParams(
            # batch blocks are independent (-> megacore on v7x); the time axis
            # carries the recurrence and must stay sequential.
            dimension_semantics=("parallel", "arbitrary"),
            vmem_limit_bytes=64 * 1024 * 1024,
        ),
    )(u, Wh_p.astype(mxu_dtype))

    # Module contract is batch-major (N, T, H); strip batch/hidden padding.
    return jnp.swapaxes(out_tmajor, 0, 1)[:N, :, :H]


def lstm_reference(x, h0, Wx, Wh, b):
    """Pure-JAX f32 reference matching the PyTorch forward semantics."""
    H = h0.shape[-1]

    def step(carry, x_t):
        prev_h, prev_c = carry
        a = x_t @ Wx + prev_h @ Wh + b
        a_i, a_f, a_o, a_g = (a[:, :H], a[:, H:2 * H],
                              a[:, 2 * H:3 * H], a[:, 3 * H:])
        i = jax.nn.sigmoid(a_i)
        f = jax.nn.sigmoid(a_f)
        o = jax.nn.sigmoid(a_o)
        g = jnp.tanh(a_g)
        next_c = f * prev_c + i * g
        next_h = o * jnp.tanh(next_c)
        return (next_h, next_c), next_h

    (_, _), hs = jax.lax.scan(step, (h0, jnp.zeros_like(h0)),
                              jnp.transpose(x, (1, 0, 2)))
    return jnp.transpose(hs, (1, 0, 2))


if __name__ == "__main__":
    N, T, D, H = 8, 16, 32, 32   # two time blocks of TB=8 -> exercises the carry

    key = jax.random.PRNGKey(0)
    k_x, k_h0, k_wx, k_wh = jax.random.split(key, 4)

    x = jax.random.normal(k_x, (N, T, D), dtype=jnp.float32)
    h0 = jax.random.normal(k_h0, (N, H), dtype=jnp.float32)

    # Deterministic parameter init mirroring the module's __init__:
    #   Wx ~ randn(D, 4H)/sqrt(D), Wh ~ randn(H, 4H)/sqrt(H), b = zeros(4H)
    Wx = jax.random.normal(k_wx, (D, 4 * H), dtype=jnp.float32) / math.sqrt(D)
    Wh = jax.random.normal(k_wh, (H, 4 * H), dtype=jnp.float32) / math.sqrt(H)
    b = jnp.zeros((4 * H,), dtype=jnp.float32)

    lstm = jax.jit(lstm_forward)
    hn = jax.block_until_ready(lstm(x, h0, Wx, Wh, b))

    hn_ref = lstm_reference(x, h0, Wx, Wh, b)
    assert hn.shape == (N, T, H)
    # bf16 MXU inputs (u, Wh, h) with f32 accumulation: compare against the
    # f32 reference at a bf16-appropriate tolerance.
    assert jnp.allclose(hn, hn_ref, rtol=5e-2, atol=5e-2), "mismatch vs JAX reference"

    print("KERNEL_OK")
</pallas_src>

<mosaic_0001>
module attributes {stable_mosaic.version = 11 : i64} {
  func.func @lstm_recurrence_kernel(%arg0: i32, %arg1: i32, %arg2: memref<8x8x512xbf16, #tpu.memory_space<vmem>>, %arg3: memref<128x512xbf16, #tpu.memory_space<vmem>>, %arg4: memref<8x8x128xf32, #tpu.memory_space<vmem>>, %arg5: memref<8x128xf32, #tpu.memory_space<vmem>>, %arg6: memref<8x128xf32, #tpu.memory_space<vmem>>) attributes {dimension_semantics = [#tpu.dimension_semantics<parallel>, #tpu.dimension_semantics<arbitrary>], iteration_bounds = array<i64: 1, 2>, scalar_prefetch = 0 : i64, scratch_operands = 2 : i64, tpu.core_type = #tpu.core_type<tc>, window_params = [{transform_indices = @transform_0, window_bounds = array<i64: 8, 8, 512>}, {pipeline_mode = #tpu.pipeline_mode<synchronous>, transform_indices = @transform_1, window_bounds = array<i64: 128, 512>}, {transform_indices = @transform_2, window_bounds = array<i64: 8, 8, 128>}]} {
    %c0_i32 = arith.constant 0 : i32
    %0 = arith.cmpi eq, %arg1, %c0_i32 : i32
    %1 = arith.extui %0 : i1 to i32
    %c0_i32_0 = arith.constant 0 : i32
    %2 = arith.cmpi ne, %1, %c0_i32_0 : i32
    scf.if %2 {
      %cst_66 = arith.constant 0.000000e+00 : f32
      %208 = vector.broadcast %cst_66 : f32 to vector<8x128xf32>
      %c0_67 = arith.constant 0 : index
      %c0_68 = arith.constant 0 : index
      %209 = vector.load %arg5[%c0_67, %c0_68] : memref<8x128xf32, #tpu.memory_space<vmem>>, vector<8x128xf32>
      tpu.vector_store %arg5[%c0_67, %c0_68], %208 {strides = array<i32>} : memref<8x128xf32, #tpu.memory_space<vmem>>, vector<8x128xf32>,
      %cst_69 = arith.constant 0.000000e+00 : f32
      %210 = vector.broadcast %cst_69 : f32 to vector<8x128xf32>
      %c0_70 = arith.constant 0 : index
      %c0_71 = arith.constant 0 : index
      %211 = vector.load %arg6[%c0_70, %c0_71] : memref<8x128xf32, #tpu.memory_space<vmem>>, vector<8x128xf32>
      tpu.vector_store %arg6[%c0_70, %c0_71], %210 {strides = array<i32>} : memref<8x128xf32, #tpu.memory_space<vmem>>, vector<8x128xf32>,
    } else {
    }
    %c0 = arith.constant 0 : index
    %c0_1 = arith.constant 0 : index
    %3 = vector.load %arg3[%c0, %c0_1] : memref<128x512xbf16, #tpu.memory_space<vmem>>, vector<128x512xbf16>
    %c0_2 = arith.constant 0 : index
    %c0_3 = arith.constant 0 : index
    %4 = vector.load %arg5[%c0_2, %c0_3] : memref<8x128xf32, #tpu.memory_space<vmem>>, vector<8x128xf32>
    %c0_4 = arith.constant 0 : index
    %c0_5 = arith.constant 0 : index
    %5 = vector.load %arg6[%c0_4, %c0_5] : memref<8x128xf32, #tpu.memory_space<vmem>>, vector<8x128xf32>
    %c0_6 = arith.constant 0 : index
    %c0_7 = arith.constant 0 : index
    %c0_8 = arith.constant 0 : index
    %6 = vector.load %arg2[%c0_6, %c0_7, %c0_8] : memref<8x8x512xbf16, #tpu.memory_space<vmem>>, vector<1x8x512xbf16>
    %7 = vector.shape_cast %6 : vector<1x8x512xbf16> to vector<8x512xbf16>
    %8 = arith.extf %7 : vector<8x512xbf16> to vector<8x512xf32>
    %9 = arith.truncf %4 : vector<8x128xf32> to vector<8x128xbf16>
    %cst = arith.constant dense<0.000000e+00> : vector<8x512xf32>
    %10 = tpu.matmul %9, %3, %cst {dimension_numbers = #tpu.dot_dimension_numbers<[1], [0], [0], [1], [0, 0, 1, 1], [], []>} : vector<8x128xbf16>, vector<128x512xbf16>, vector<8x512xf32> -> vector<8x512xf32>
    %11 = arith.addf %8, %10 : vector<8x512xf32>
    %12 = vector.extract_strided_slice %11 {offsets = [0, 0], sizes = [8, 384], strides = [1, 1]} : vector<8x512xf32> to vector<8x384xf32>
    %13 = arith.negf %12 : vector<8x384xf32>
    %14 = math.exp %13 : vector<8x384xf32>
    %cst_9 = arith.constant 1.000000e+00 : f32
    %15 = vector.broadcast %cst_9 : f32 to vector<8x384xf32>
    %16 = arith.addf %15, %14 : vector<8x384xf32>
    %17 = arith.divf %15, %16 : vector<8x384xf32>
    %18 = vector.extract_strided_slice %11 {offsets = [0, 384], sizes = [8, 128], strides = [1, 1]} : vector<8x512xf32> to vector<8x128xf32>
    %19 = math.tanh %18 : vector<8x128xf32>
    %20 = vector.extract_strided_slice %17 {offsets = [0, 0], sizes = [8, 128], strides = [1, 1]} : vector<8x384xf32> to vector<8x128xf32>
    %21 = vector.extract_strided_slice %17 {offsets = [0, 128], sizes = [8, 128], strides = [1, 1]} : vector<8x384xf32> to vector<8x128xf32>
    %22 = vector.extract_strided_slice %17 {offsets = [0, 256], sizes = [8, 128], strides = [1, 1]} : vector<8x384xf32> to vector<8x128xf32>
    %23 = arith.mulf %21, %5 : vector<8x128xf32>
    %24 = arith.mulf %20, %19 : vector<8x128xf32>
    %25 = arith.addf %23, %24 : vector<8x128xf32>
    %26 = math.tanh %25 : vector<8x128xf32>
    %27 = arith.mulf %22, %26 : vector<8x128xf32>
    %c0_10 = arith.constant 0 : index
    %c0_11 = arith.constant 0 : index
    %c0_12 = arith.constant 0 : index
    %28 = vector.load %arg4[%c0_10, %c0_11, %c0_12] : memref<8x8x128xf32, #tpu.memory_space<vmem>>, vector<1x8x128xf32>
    %29 = vector.shape_cast %28 : vector<1x8x128xf32> to vector<8x128xf32>
    %30 = vector.shape_cast %27 : vector<8x128xf32> to vector<1x8x128xf32>
    tpu.vector_store %arg4[%c0_10, %c0_11, %c0_12], %30 {strides = array<i32>} : memref<8x8x128xf32, #tpu.memory_space<vmem>>, vector<1x8x128xf32>,
    %c1 = arith.constant 1 : index
    %c0_13 = arith.constant 0 : index
    %c0_14 = arith.constant 0 : index
    %31 = vector.load %arg2[%c1, %c0_13, %c0_14] : memref<8x8x512xbf16, #tpu.memory_space<vmem>>, vector<1x8x512xbf16>
    %32 = vector.shape_cast %31 : vector<1x8x512xbf16> to vector<8x512xbf16>
    %33 = arith.extf %32 : vector<8x512xbf16> to vector<8x512xf32>
    %34 = arith.truncf %27 : vector<8x128xf32> to vector<8x128xbf16>
    %cst_15 = arith.constant dense<0.000000e+00> : vector<8x512xf32>
    %35 = tpu.matmul %34, %3, %cst_15 {dimension_numbers = #tpu.dot_dimension_numbers<[1], [0], [0], [1], [0, 0, 1, 1], [], []>} : vector<8x128xbf16>, vector<128x512xbf16>, vector<8x512xf32> -> vector<8x512xf32>
    %36 = arith.addf %33, %35 : vector<8x512xf32>
    %37 = vector.extract_strided_slice %36 {offsets = [0, 0], sizes = [8, 384], strides = [1, 1]} : vector<8x512xf32> to vector<8x384xf32>
    %38 = arith.negf %37 : vector<8x384xf32>
    %39 = math.exp %38 : vector<8x384xf32>
    %cst_16 = arith.constant 1.000000e+00 : f32
    %40 = vector.broadcast %cst_16 : f32 to vector<8x384xf32>
    %41 = arith.addf %40, %39 : vector<8x384xf32>
    %42 = arith.divf %40, %41 : vector<8x384xf32>
    %43 = vector.extract_strided_slice %36 {offsets = [0, 384], sizes = [8, 128], strides = [1, 1]} : vector<8x512xf32> to vector<8x128xf32>
    %44 = math.tanh %43 : vector<8x128xf32>
    %45 = vector.extract_strided_slice %42 {offsets = [0, 0], sizes = [8, 128], strides = [1, 1]} : vector<8x384xf32> to vector<8x128xf32>
    %46 = vector.extract_strided_slice %42 {offsets = [0, 128], sizes = [8, 128], strides = [1, 1]} : vector<8x384xf32> to vector<8x128xf32>
    %47 = vector.extract_strided_slice %42 {offsets = [0, 256], sizes = [8, 128], strides = [1, 1]} : vector<8x384xf32> to vector<8x128xf32>
    %48 = arith.mulf %46, %25 : vector<8x128xf32>
    %49 = arith.mulf %45, %44 : vector<8x128xf32>
    %50 = arith.addf %48, %49 : vector<8x128xf32>
    %51 = math.tanh %50 : vector<8x128xf32>
    %52 = arith.mulf %47, %51 : vector<8x128xf32>
    %c1_17 = arith.constant 1 : index
    %c0_18 = arith.constant 0 : index
    %c0_19 = arith.constant 0 : index
    %53 = vector.load %arg4[%c1_17, %c0_18, %c0_19] : memref<8x8x128xf32, #tpu.memory_space<vmem>>, vector<1x8x128xf32>
    %54 = vector.shape_cast %53 : vector<1x8x128xf32> to vector<8x128xf32>
    %55 = vector.shape_cast %52 : vector<8x128xf32> to vector<1x8x128xf32>
    tpu.vector_store %arg4[%c1_17, %c0_18, %c0_19], %55 {strides = array<i32>} : memref<8x8x128xf32, #tpu.memory_space<vmem>>, vector<1x8x128xf32>,
    %c2 = arith.constant 2 : index
    %c0_20 = arith.constant 0 : index
    %c0_21 = arith.constant 0 : index
    %56 = vector.load %arg2[%c2, %c0_20, %c0_21] : memref<8x8x512xbf16, #tpu.memory_space<vmem>>, vector<1x8x512xbf16>
    %57 = vector.shape_cast %56 : vector<1x8x512xbf16> to vector<8x512xbf16>
    %58 = arith.extf %57 : vector<8x512xbf16> to vector<8x512xf32>
    %59 = arith.truncf %52 : vector<8x128xf32> to vector<8x128xbf16>
    %cst_22 = arith.constant dense<0.000000e+00> : vector<8x512xf32>
    %60 = tpu.matmul %59, %3, %cst_22 {dimension_numbers = #tpu.dot_dimension_numbers<[1], [0], [0], [1], [0, 0, 1, 1], [], []>} : vector<8x128xbf16>, vector<128x512xbf16>, vector<8x512xf32> -> vector<8x512xf32>
    %61 = arith.addf %58, %60 : vector<8x512xf32>
    %62 = vector.extract_strided_slice %61 {offsets = [0, 0], sizes = [8, 384], strides = [1, 1]} : vector<8x512xf32> to vector<8x384xf32>
    %63 = arith.negf %62 : vector<8x384xf32>
    %64 = math.exp %63 : vector<8x384xf32>
    %cst_23 = arith.constant 1.000000e+00 : f32
    %65 = vector.broadcast %cst_23 : f32 to vector<8x384xf32>
    %66 = arith.addf %65, %64 : vector<8x384xf32>
    %67 = arith.divf %65, %66 : vector<8x384xf32>
    %68 = vector.extract_strided_slice %61 {offsets = [0, 384], sizes = [8, 128], strides = [1, 1]} : vector<8x512xf32> to vector<8x128xf32>
    %69 = math.tanh %68 : vector<8x128xf32>
    %70 = vector.extract_strided_slice %67 {offsets = [0, 0], sizes = [8, 128], strides = [1, 1]} : vector<8x384xf32> to vector<8x128xf32>
    %71 = vector.extract_strided_slice %67 {offsets = [0, 128], sizes = [8, 128], strides = [1, 1]} : vector<8x384xf32> to vector<8x128xf32>
    %72 = vector.extract_strided_slice %67 {offsets = [0, 256], sizes = [8, 128], strides = [1, 1]} : vector<8x384xf32> to vector<8x128xf32>
    %73 = arith.mulf %71, %50 : vector<8x128xf32>
    %74 = arith.mulf %70, %69 : vector<8x128xf32>
    %75 = arith.addf %73, %74 : vector<8x128xf32>
    %76 = math.tanh %75 : vector<8x128xf32>
    %77 = arith.mulf %72, %76 : vector<8x128xf32>
    %c2_24 = arith.constant 2 : index
    %c0_25 = arith.constant 0 : index
    %c0_26 = arith.constant 0 : index
    %78 = vector.load %arg4[%c2_24, %c0_25, %c0_26] : memref<8x8x128xf32, #tpu.memory_space<vmem>>, vector<1x8x128xf32>
    %79 = vector.shape_cast %78 : vector<1x8x128xf32> to vector<8x128xf32>
    %80 = vector.shape_cast %77 : vector<8x128xf32> to vector<1x8x128xf32>
    tpu.vector_store %arg4[%c2_24, %c0_25, %c0_26], %80 {strides = array<i32>} : memref<8x8x128xf32, #tpu.memory_space<vmem>>, vector<1x8x128xf32>,
    %c3 = arith.constant 3 : index
    %c0_27 = arith.constant 0 : index
    %c0_28 = arith.constant 0 : index
    %81 = vector.load %arg2[%c3, %c0_27, %c0_28] : memref<8x8x512xbf16, #tpu.memory_space<vmem>>, vector<1x8x512xbf16>
    %82 = vector.shape_cast %81 : vector<1x8x512xbf16> to vector<8x512xbf16>
    %83 = arith.extf %82 : vector<8x512xbf16> to vector<8x512xf32>
    %84 = arith.truncf %77 : vector<8x128xf32> to vector<8x128xbf16>
    %cst_29 = arith.constant dense<0.000000e+00> : vector<8x512xf32>
    %85 = tpu.matmul %84, %3, %cst_29 {dimension_numbers = #tpu.dot_dimension_numbers<[1], [0], [0], [1], [0, 0, 1, 1], [], []>} : vector<8x128xbf16>, vector<128x512xbf16>, vector<8x512xf32> -> vector<8x512xf32>
    %86 = arith.addf %83, %85 : vector<8x512xf32>
    %87 = vector.extract_strided_slice %86 {offsets = [0, 0], sizes = [8, 384], strides = [1, 1]} : vector<8x512xf32> to vector<8x384xf32>
    %88 = arith.negf %87 : vector<8x384xf32>
    %89 = math.exp %88 : vector<8x384xf32>
    %cst_30 = arith.constant 1.000000e+00 : f32
    %90 = vector.broadcast %cst_30 : f32 to vector<8x384xf32>
    %91 = arith.addf %90, %89 : vector<8x384xf32>
    %92 = arith.divf %90, %91 : vector<8x384xf32>
    %93 = vector.extract_strided_slice %86 {offsets = [0, 384], sizes = [8, 128], strides = [1, 1]} : vector<8x512xf32> to vector<8x128xf32>
    %94 = math.tanh %93 : vector<8x128xf32>
    %95 = vector.extract_strided_slice %92 {offsets = [0, 0], sizes = [8, 128], strides = [1, 1]} : vector<8x384xf32> to vector<8x128xf32>
    %96 = vector.extract_strided_slice %92 {offsets = [0, 128], sizes = [8, 128], strides = [1, 1]} : vector<8x384xf32> to vector<8x128xf32>
    %97 = vector.extract_strided_slice %92 {offsets = [0, 256], sizes = [8, 128], strides = [1, 1]} : vector<8x384xf32> to vector<8x128xf32>
    %98 = arith.mulf %96, %75 : vector<8x128xf32>
    %99 = arith.mulf %95, %94 : vector<8x128xf32>
    %100 = arith.addf %98, %99 : vector<8x128xf32>
    %101 = math.tanh %100 : vector<8x128xf32>
    %102 = arith.mulf %97, %101 : vector<8x128xf32>
    %c3_31 = arith.constant 3 : index
    %c0_32 = arith.constant 0 : index
    %c0_33 = arith.constant 0 : index
    %103 = vector.load %arg4[%c3_31, %c0_32, %c0_33] : memref<8x8x128xf32, #tpu.memory_space<vmem>>, vector<1x8x128xf32>
    %104 = vector.shape_cast %103 : vector<1x8x128xf32> to vector<8x128xf32>
    %105 = vector.shape_cast %102 : vector<8x128xf32> to vector<1x8x128xf32>
    tpu.vector_store %arg4[%c3_31, %c0_32, %c0_33], %105 {strides = array<i32>} : memref<8x8x128xf32, #tpu.memory_space<vmem>>, vector<1x8x128xf32>,
    %c4 = arith.constant 4 : index
    %c0_34 = arith.constant 0 : index
    %c0_35 = arith.constant 0 : index
    %106 = vector.load %arg2[%c4, %c0_34, %c0_35] : memref<8x8x512xbf16, #tpu.memory_space<vmem>>, vector<1x8x512xbf16>
    %107 = vector.shape_cast %106 : vector<1x8x512xbf16> to vector<8x512xbf16>
    %108 = arith.extf %107 : vector<8x512xbf16> to vector<8x512xf32>
    %109 = arith.truncf %102 : vector<8x128xf32> to vector<8x128xbf16>
    %cst_36 = arith.constant dense<0.000000e+00> : vector<8x512xf32>
    %110 = tpu.matmul %109, %3, %cst_36 {dimension_numbers = #tpu.dot_dimension_numbers<[1], [0], [0], [1], [0, 0, 1, 1], [], []>} : vector<8x128xbf16>, vector<128x512xbf16>, vector<8x512xf32> -> vector<8x512xf32>
    %111 = arith.addf %108, %110 : vector<8x512xf32>
    %112 = vector.extract_strided_slice %111 {offsets = [0, 0], sizes = [8, 384], strides = [1, 1]} : vector<8x512xf32> to vector<8x384xf32>
    %113 = arith.negf %112 : vector<8x384xf32>
    %114 = math.exp %113 : vector<8x384xf32>
    %cst_37 = arith.constant 1.000000e+00 : f32
    %115 = vector.broadcast %cst_37 : f32 to vector<8x384xf32>
    %116 = arith.addf %115, %114 : vector<8x384xf32>
    %117 = arith.divf %115, %116 : vector<8x384xf32>
    %118 = vector.extract_strided_slice %111 {offsets = [0, 384], sizes = [8, 128], strides = [1, 1]} : vector<8x512xf32> to vector<8x128xf32>
    %119 = math.tanh %118 : vector<8x128xf32>
    %120 = vector.extract_strided_slice %117 {offsets = [0, 0], sizes = [8, 128], strides = [1, 1]} : vector<8x384xf32> to vector<8x128xf32>
    %121 = vector.extract_strided_slice %117 {offsets = [0, 128], sizes = [8, 128], strides = [1, 1]} : vector<8x384xf32> to vector<8x128xf32>
    %122 = vector.extract_strided_slice %117 {offsets = [0, 256], sizes = [8, 128], strides = [1, 1]} : vector<8x384xf32> to vector<8x128xf32>
    %123 = arith.mulf %121, %100 : vector<8x128xf32>
    %124 = arith.mulf %120, %119 : vector<8x128xf32>
    %125 = arith.addf %123, %124 : vector<8x128xf32>
    %126 = math.tanh %125 : vector<8x128xf32>
    %127 = arith.mulf %122, %126 : vector<8x128xf32>
    %c4_38 = arith.constant 4 : index
    %c0_39 = arith.constant 0 : index
    %c0_40 = arith.constant 0 : index
    %128 = vector.load %arg4[%c4_38, %c0_39, %c0_40] : memref<8x8x128xf32, #tpu.memory_space<vmem>>, vector<1x8x128xf32>
    %129 = vector.shape_cast %128 : vector<1x8x128xf32> to vector<8x128xf32>
    %130 = vector.shape_cast %127 : vector<8x128xf32> to vector<1x8x128xf32>
    tpu.vector_store %arg4[%c4_38, %c0_39, %c0_40], %130 {strides = array<i32>} : memref<8x8x128xf32, #tpu.memory_space<vmem>>, vector<1x8x128xf32>,
    %c5 = arith.constant 5 : index
    %c0_41 = arith.constant 0 : index
    %c0_42 = arith.constant 0 : index
    %131 = vector.load %arg2[%c5, %c0_41, %c0_42] : memref<8x8x512xbf16, #tpu.memory_space<vmem>>, vector<1x8x512xbf16>
    %132 = vector.shape_cast %131 : vector<1x8x512xbf16> to vector<8x512xbf16>
    %133 = arith.extf %132 : vector<8x512xbf16> to vector<8x512xf32>
    %134 = arith.truncf %127 : vector<8x128xf32> to vector<8x128xbf16>
    %cst_43 = arith.constant dense<0.000000e+00> : vector<8x512xf32>
    %135 = tpu.matmul %134, %3, %cst_43 {dimension_numbers = #tpu.dot_dimension_numbers<[1], [0], [0], [1], [0, 0, 1, 1], [], []>} : vector<8x128xbf16>, vector<128x512xbf16>, vector<8x512xf32> -> vector<8x512xf32>
    %136 = arith.addf %133, %135 : vector<8x512xf32>
    %137 = vector.extract_strided_slice %136 {offsets = [0, 0], sizes = [8, 384], strides = [1, 1]} : vector<8x512xf32> to vector<8x384xf32>
    %138 = arith.negf %137 : vector<8x384xf32>
    %139 = math.exp %138 : vector<8x384xf32>
    %cst_44 = arith.constant 1.000000e+00 : f32
    %140 = vector.broadcast %cst_44 : f32 to vector<8x384xf32>
    %141 = arith.addf %140, %139 : vector<8x384xf32>
    %142 = arith.divf %140, %141 : vector<8x384xf32>
    %143 = vector.extract_strided_slice %136 {offsets = [0, 384], sizes = [8, 128], strides = [1, 1]} : vector<8x512xf32> to vector<8x128xf32>
    %144 = math.tanh %143 : vector<8x128xf32>
    %145 = vector.extract_strided_slice %142 {offsets = [0, 0], sizes = [8, 128], strides = [1, 1]} : vector<8x384xf32> to vector<8x128xf32>
    %146 = vector.extract_strided_slice %142 {offsets = [0, 128], sizes = [8, 128], strides = [1, 1]} : vector<8x384xf32> to vector<8x128xf32>
    %147 = vector.extract_strided_slice %142 {offsets = [0, 256], sizes = [8, 128], strides = [1, 1]} : vector<8x384xf32> to vector<8x128xf32>
    %148 = arith.mulf %146, %125 : vector<8x128xf32>
    %149 = arith.mulf %145, %144 : vector<8x128xf32>
    %150 = arith.addf %148, %149 : vector<8x128xf32>
    %151 = math.tanh %150 : vector<8x128xf32>
    %152 = arith.mulf %147, %151 : vector<8x128xf32>
    %c5_45 = arith.constant 5 : index
    %c0_46 = arith.constant 0 : index
    %c0_47 = arith.constant 0 : index
    %153 = vector.load %arg4[%c5_45, %c0_46, %c0_47] : memref<8x8x128xf32, #tpu.memory_space<vmem>>, vector<1x8x128xf32>
    %154 = vector.shape_cast %153 : vector<1x8x128xf32> to vector<8x128xf32>
    %155 = vector.shape_cast %152 : vector<8x128xf32> to vector<1x8x128xf32>
    tpu.vector_store %arg4[%c5_45, %c0_46, %c0_47], %155 {strides = array<i32>} : memref<8x8x128xf32, #tpu.memory_space<vmem>>, vector<1x8x128xf32>,
    %c6 = arith.constant 6 : index
    %c0_48 = arith.constant 0 : index
    %c0_49 = arith.constant 0 : index
    %156 = vector.load %arg2[%c6, %c0_48, %c0_49] : memref<8x8x512xbf16, #tpu.memory_space<vmem>>, vector<1x8x512xbf16>
    %157 = vector.shape_cast %156 : vector<1x8x512xbf16> to vector<8x512xbf16>
    %158 = arith.extf %157 : vector<8x512xbf16> to vector<8x512xf32>
    %159 = arith.truncf %152 : vector<8x128xf32> to vector<8x128xbf16>
    %cst_50 = arith.constant dense<0.000000e+00> : vector<8x512xf32>
    %160 = tpu.matmul %159, %3, %cst_50 {dimension_numbers = #tpu.dot_dimension_numbers<[1], [0], [0], [1], [0, 0, 1, 1], [], []>} : vector<8x128xbf16>, vector<128x512xbf16>, vector<8x512xf32> -> vector<8x512xf32>
    %161 = arith.addf %158, %160 : vector<8x512xf32>
    %162 = vector.extract_strided_slice %161 {offsets = [0, 0], sizes = [8, 384], strides = [1, 1]} : vector<8x512xf32> to vector<8x384xf32>
    %163 = arith.negf %162 : vector<8x384xf32>
    %164 = math.exp %163 : vector<8x384xf32>
    %cst_51 = arith.constant 1.000000e+00 : f32
    %165 = vector.broadcast %cst_51 : f32 to vector<8x384xf32>
    %166 = arith.addf %165, %164 : vector<8x384xf32>
    %167 = arith.divf %165, %166 : vector<8x384xf32>
    %168 = vector.extract_strided_slice %161 {offsets = [0, 384], sizes = [8, 128], strides = [1, 1]} : vector<8x512xf32> to vector<8x128xf32>
    %169 = math.tanh %168 : vector<8x128xf32>
    %170 = vector.extract_strided_slice %167 {offsets = [0, 0], sizes = [8, 128], strides = [1, 1]} : vector<8x384xf32> to vector<8x128xf32>
    %171 = vector.extract_strided_slice %167 {offsets = [0, 128], sizes = [8, 128], strides = [1, 1]} : vector<8x384xf32> to vector<8x128xf32>
    %172 = vector.extract_strided_slice %167 {offsets = [0, 256], sizes = [8, 128], strides = [1, 1]} : vector<8x384xf32> to vector<8x128xf32>
    %173 = arith.mulf %171, %150 : vector<8x128xf32>
    %174 = arith.mulf %170, %169 : vector<8x128xf32>
    %175 = arith.addf %173, %174 : vector<8x128xf32>
    %176 = math.tanh %175 : vector<8x128xf32>
    %177 = arith.mulf %172, %176 : vector<8x128xf32>
    %c6_52 = arith.constant 6 : index
    %c0_53 = arith.constant 0 : index
    %c0_54 = arith.constant 0 : index
    %178 = vector.load %arg4[%c6_52, %c0_53, %c0_54] : memref<8x8x128xf32, #tpu.memory_space<vmem>>, vector<1x8x128xf32>
    %179 = vector.shape_cast %178 : vector<1x8x128xf32> to vector<8x128xf32>
    %180 = vector.shape_cast %177 : vector<8x128xf32> to vector<1x8x128xf32>
    tpu.vector_store %arg4[%c6_52, %c0_53, %c0_54], %180 {strides = array<i32>} : memref<8x8x128xf32, #tpu.memory_space<vmem>>, vector<1x8x128xf32>,
    %c7 = arith.constant 7 : index
    %c0_55 = arith.constant 0 : index
    %c0_56 = arith.constant 0 : index
    %181 = vector.load %arg2[%c7, %c0_55, %c0_56] : memref<8x8x512xbf16, #tpu.memory_space<vmem>>, vector<1x8x512xbf16>
    %182 = vector.shape_cast %181 : vector<1x8x512xbf16> to vector<8x512xbf16>
    %183 = arith.extf %182 : vector<8x512xbf16> to vector<8x512xf32>
    %184 = arith.truncf %177 : vector<8x128xf32> to vector<8x128xbf16>
    %cst_57 = arith.constant dense<0.000000e+00> : vector<8x512xf32>
    %185 = tpu.matmul %184, %3, %cst_57 {dimension_numbers = #tpu.dot_dimension_numbers<[1], [0], [0], [1], [0, 0, 1, 1], [], []>} : vector<8x128xbf16>, vector<128x512xbf16>, vector<8x512xf32> -> vector<8x512xf32>
    %186 = arith.addf %183, %185 : vector<8x512xf32>
    %187 = vector.extract_strided_slice %186 {offsets = [0, 0], sizes = [8, 384], strides = [1, 1]} : vector<8x512xf32> to vector<8x384xf32>
    %188 = arith.negf %187 : vector<8x384xf32>
    %189 = math.exp %188 : vector<8x384xf32>
    %cst_58 = arith.constant 1.000000e+00 : f32
    %190 = vector.broadcast %cst_58 : f32 to vector<8x384xf32>
    %191 = arith.addf %190, %189 : vector<8x384xf32>
    %192 = arith.divf %190, %191 : vector<8x384xf32>
    %193 = vector.extract_strided_slice %186 {offsets = [0, 384], sizes = [8, 128], strides = [1, 1]} : vector<8x512xf32> to vector<8x128xf32>
    %194 = math.tanh %193 : vector<8x128xf32>
    %195 = vector.extract_strided_slice %192 {offsets = [0, 0], sizes = [8, 128], strides = [1, 1]} : vector<8x384xf32> to vector<8x128xf32>
    %196 = vector.extract_strided_slice %192 {offsets = [0, 128], sizes = [8, 128], strides = [1, 1]} : vector<8x384xf32> to vector<8x128xf32>
    %197 = vector.extract_strided_slice %192 {offsets = [0, 256], sizes = [8, 128], strides = [1, 1]} : vector<8x384xf32> to vector<8x128xf32>
    %198 = arith.mulf %196, %175 : vector<8x128xf32>
    %199 = arith.mulf %195, %194 : vector<8x128xf32>
    %200 = arith.addf %198, %199 : vector<8x128xf32>
    %201 = math.tanh %200 : vector<8x128xf32>
    %202 = arith.mulf %197, %201 : vector<8x128xf32>
    %c7_59 = arith.constant 7 : index
    %c0_60 = arith.constant 0 : index
    %c0_61 = arith.constant 0 : index
    %203 = vector.load %arg4[%c7_59, %c0_60, %c0_61] : memref<8x8x128xf32, #tpu.memory_space<vmem>>, vector<1x8x128xf32>
    %204 = vector.shape_cast %203 : vector<1x8x128xf32> to vector<8x128xf32>
    %205 = vector.shape_cast %202 : vector<8x128xf32> to vector<1x8x128xf32>
    tpu.vector_store %arg4[%c7_59, %c0_60, %c0_61], %205 {strides = array<i32>} : memref<8x8x128xf32, #tpu.memory_space<vmem>>, vector<1x8x128xf32>,
    %c0_62 = arith.constant 0 : index
    %c0_63 = arith.constant 0 : index
    %206 = vector.load %arg5[%c0_62, %c0_63] : memref<8x128xf32, #tpu.memory_space<vmem>>, vector<8x128xf32>
    tpu.vector_store %arg5[%c0_62, %c0_63], %202 {strides = array<i32>} : memref<8x128xf32, #tpu.memory_space<vmem>>, vector<8x128xf32>,
    %c0_64 = arith.constant 0 : index
    %c0_65 = arith.constant 0 : index
    %207 = vector.load %arg6[%c0_64, %c0_65] : memref<8x128xf32, #tpu.memory_space<vmem>>, vector<8x128xf32>
    tpu.vector_store %arg6[%c0_64, %c0_65], %200 {strides = array<i32>} : memref<8x128xf32, #tpu.memory_space<vmem>>, vector<8x128xf32>,
    return
  }
  func.func @transform_0(%arg0: i32, %arg1: i32) -> (i32, i32, i32) {
    %c0_i32 = arith.constant 0 : i32
    %c0_i32_0 = arith.constant 0 : i32
    return %arg1, %arg0, %c0_i32 : i32, i32, i32
  }
  func.func @transform_1(%arg0: i32, %arg1: i32) -> (i32, i32) {
    %c0_i32 = arith.constant 0 : i32
    %c0_i32_0 = arith.constant 0 : i32
    %c0_i32_1 = arith.constant 0 : i32
    return %c0_i32, %c0_i32_0 : i32, i32
  }
  func.func @transform_2(%arg0: i32, %arg1: i32) -> (i32, i32, i32) {
    %c0_i32 = arith.constant 0 : i32
    %c0_i32_0 = arith.constant 0 : i32
    return %arg1, %arg0, %c0_i32 : i32, i32, i32
  }
}

</mosaic_0001>

<llo_original>
// kernel: lstm_forward.1
$region0: #{lstm_forward.1}
  #allocation0 [shape = 'u32[]', space=smem, size = 0x4, offset = 0x4, fixed_abs, tag = 'smem constant byte address 0x4 - core index']
  #allocation1 [shape = 'u32[144,128]{1,0:T(1,128)}', space=vmem, size = 0x12000, scoped, tag = 'internal scratch']
  #allocation2 [shape = 'f32[8,128]{1,0:T(8,128)}', space=vmem, size = 0x1000, scoped, tag = 'scratch operand']
  #allocation3 [shape = 'f32[8,128]{1,0:T(8,128)}', space=vmem, size = 0x1000, scoped, tag = 'scratch operand']
  %s0 = inlined_call_operand.hbm [shape: bf16[16,8,512], index: 0, kind: input, shape index: {}]
  %s1 = inlined_call_operand.hbm [shape: bf16[128,512], index: 1, kind: input, shape index: {}]
  %s2 = inlined_call_operand.hbm [shape: f32[16,8,128], index: 2, kind: output, shape index: {}]
  %s3 = sld [smem:[#allocation0]]
  $region53: #{lstm_forward.1} parent=0
    _
  %s5 = ssub.s32 1, %s3
  %s6 = scalar_select 0, %s5, %s3
  $region1: #{lstm_forward.1} parent=0
    #allocation4 [shape = 'u8[131072]{0}', space=vmem, size = 0x20000, scoped, tag = 'input window, operand 0']
    #allocation5 [shape = 's32[2]{0}', space=sflag, size = 0x8, scoped, tag = 'scoped memory for lstm_forward.1']
    #allocation6 [shape = 's32[2]{0}', space=sflag, size = 0x8, scoped, tag = 'scoped memory for lstm_forward.1']
    #allocation7 [shape = 'u8[131072]{0}', space=vmem, size = 0x20000, scoped, tag = 'input window, operand 1, single buffered']
    #allocation8 [shape = 's32[1]{0}', space=sflag, size = 0x4, scoped, tag = 'scoped memory for lstm_forward.1']
    #allocation9 [shape = 'u8[65536]{0}', space=vmem, size = 0x10000, scoped, tag = 'output window, operand 0']
    %7 = vsyncpa [#allocation5], 0
    %s8 = scalar_lea.sflag [#allocation5], 1
    %9 = vsyncpa %s8, 0
    %10 = vsyncpa [#allocation8], 0
    %11 = vsyncpa [#allocation6], 0
    %s12 = scalar_lea.sflag [#allocation6], 1
    %13 = vsyncpa %s12, 0
    loop: start=0, step=1, limit=4
    $region2: #{lstm_forward.1} parent=1 // loop_pre_header
      _
    $region3: #{lstm_forward.1} parent=1 // loop_header
      %s15 = sphi 0, %s19
      %p16 = scmp.ge.s32.totalorder %s15, 4
      %s22 = sphi 0, %s34
      %s23 = sphi 0, %s30
      %s24 = sphi 0, %s22
      %s25 = sphi 0, %s23
      %s26 = sphi 0, %s24
      %s27 = sphi 0, %s25
      %s39 = sphi 0, %s41
      %s42 = sphi 0, %s39
      %s43 = sphi 0, %s42
      %s59 = sphi 0, %s43
      %s63 = sphi 0, %s63
      %s65 = sphi 0, %s63
      %s66 = sphi 0, %s65
      %s80 = sphi 0, %s66
      %s88 = sphi 0, %s90
      %s91 = sphi 0, %s88
      %s92 = sphi 0, %s91
      %s108 = sphi 0, %s92
    $region4: #{lstm_forward.1} parent=1 // loop_header_branch
      %18 = sbr.rel (%p16) target = $region8
    $region5: #{lstm_forward.1} parent=1 // loop_body
      %s20 = ssub.s32 %s15, 1
      %s21 = ssub.s32 %s15, 2
      %s28 = sadd.s32 1, %s23
      %p29 = scmp.ge.s32.totalorder %s28, 2
      %s30 = scalar_select %p29, 0, %s28
      %s31 = sadd.s32 1, %s22
      %s32 = scalar_select %p29, %s31, %s22
      %p33 = scmp.ge.s32.totalorder %s32, 1
      %s34 = scalar_select %p33, 0, %s32
      %s35 = ssub.s32 %s23, %s30
      %s36 = ssub.s32 %s22, %s34
      %s37 = sor.u32 %s35, %s36
      %p38 = scmp.eq.s32.totalorder %s37, 0
      %s40 = sadd.s32 %s39, 1
      %s41 = scalar_select %p38, %s39, %s40
      %p44 = pneg %p38
      %p45 = scmp.eq.s32.totalorder %s15, 1
      %p46 = por %p44, %p45
      %p47 = scmp.ne.s32.totalorder %s39, %s42
      %p48 = scmp.eq.s32.totalorder %s15, 0
      %p49 = por %p47, %p48
      %p50 = scmp.ne.s32.totalorder %s39, %s42
      %p51 = scmp.eq.s32.totalorder %s20, 1
      %p52 = por %p50, %p51
      %p53 = scmp.ne.s32.totalorder %s42, %s43
      %p54 = scmp.eq.s32.totalorder %s20, 0
      %p55 = por %p53, %p54
      %p56 = scmp.ne.s32.totalorder %s42, %s43
      %p57 = scmp.eq.s32.totalorder %s21, 1
      %p58 = por %p56, %p57
      %p60 = scmp.ne.s32.totalorder %s43, %s59
      %p61 = scmp.eq.s32.totalorder %s21, 0
      %p62 = por %p60, %p61
      %s64 = sadd.s32 %s63, 1
      %p67 = scmp.eq.s32.totalorder %s15, 1
      %p68 = scmp.ne.s32.totalorder %s63, %s65
      %p69 = scmp.eq.s32.totalorder %s15, 0
      %p70 = por %p68, %p69
      %p71 = scmp.ne.s32.totalorder %s63, %s65
      %p72 = scmp.eq.s32.totalorder %s20, 1
      %p73 = por %p71, %p72
      %p74 = scmp.ne.s32.totalorder %s65, %s66
      %p75 = scmp.eq.s32.totalorder %s20, 0
      %p76 = por %p74, %p75
      %p77 = scmp.ne.s32.totalorder %s65, %s66
      %p78 = scmp.eq.s32.totalorder %s21, 1
      %p79 = por %p77, %p78
      %p81 = scmp.ne.s32.totalorder %s66, %s80
      %p82 = scmp.eq.s32.totalorder %s21, 0
      %p83 = por %p81, %p82
      %s84 = ssub.s32 %s23, %s30
      %s85 = ssub.s32 %s22, %s34
      %s86 = sor.u32 %s84, %s85
      %p87 = scmp.eq.s32.totalorder %s86, 0
      %s89 = sadd.s32 %s88, 1
      %s90 = scalar_select %p87, %s88, %s89
      %p93 = pneg %p87
      %p94 = scmp.eq.s32.totalorder %s15, 1
      %p95 = por %p93, %p94
      %p96 = scmp.ne.s32.totalorder %s88, %s91
      %p97 = scmp.eq.s32.totalorder %s15, 0
      %p98 = por %p96, %p97
      %p99 = scmp.ne.s32.totalorder %s88, %s91
      %p100 = scmp.eq.s32.totalorder %s20, 1
      %p101 = por %p99, %p100
      %p102 = scmp.ne.s32.totalorder %s91, %s92
      %p103 = scmp.eq.s32.totalorder %s20, 0
      %p104 = por %p102, %p103
      %p105 = scmp.ne.s32.totalorder %s91, %s92
      %p106 = scmp.eq.s32.totalorder %s21, 1
      %p107 = por %p105, %p106
      %p109 = scmp.ne.s32.totalorder %s92, %s108
      %p110 = scmp.eq.s32.totalorder %s21, 0
      %p111 = por %p109, %p110
      %p112 = scmp.le.s32.totalorder 1, %s15
      %p113 = scmp.lt.s32.totalorder %s15, 3
      %p114 = pnand %p112, %p113
      %p115 = pneg %p114
      // Predicated region
      $region9: #{lstm_forward.1} parent=5 // pred_check
        _
      $region10: #{lstm_forward.1} parent=5 // pred_check_branch
        %117 = sbr.rel (%p114) target = $region12
      $region11: #{lstm_forward.1} parent=5 // pred_region
        %s118 = ssub.s32 %s15, 1
        // Predicated region
        $region13: #{lstm_forward.1} parent=11 // pred_check
          %p119 = pneg %p76
        $region14: #{lstm_forward.1} parent=11 // pred_check_branch
          %121 = sbr.rel (%p119) target = $region16
        $region15: #{lstm_forward.1} parent=11 // pred_region
          %s123 = ssub.s32 4096, 4096
          %124 = vsyncadd [#allocation8], %s123
          %s125 = sshll.u32 [#allocation7], 4
          %s126 = int_to_ptr.vmem [resolvable:$true] %s125
          %131 = dma.hbm_to_vmem [thread:$0]  %s1, 4096, %s126, [#allocation8], 256, 256, 16
        $region16: #{lstm_forward.1} parent=11 // pred_fallthru
          _
      $region12: #{lstm_forward.1} parent=5 // pred_fallthru
        _
      %p132 = scmp.lt.s32.totalorder %s15, 2
      // Predicated region
      $region17: #{lstm_forward.1} parent=5 // pred_check
        %p133 = pneg %p132
      $region18: #{lstm_forward.1} parent=5 // pred_check_branch
        %135 = sbr.rel (%p133) target = $region20
      $region19: #{lstm_forward.1} parent=5 // pred_region
        // Predicated region
        $region21: #{lstm_forward.1} parent=19 // pred_check
          %p136 = pneg %p49
        $region22: #{lstm_forward.1} parent=19 // pred_check_branch
          %138 = sbr.rel (%p136) target = $region24
        $region23: #{lstm_forward.1} parent=19 // pred_region
          %s139 = sand.u32 %s39, 1
          %s140 = scalar_lea.sflag [#allocation5], %s139
          %s141 = sand.u32 %s39, 1
          %s142 = smul.addr %s141, 128
          %s143 = scalar_lea.vmem [#allocation4], %s142
          %s144 = smul.u32 8, %s23
          %s146 = ssub.s32 2048, 2048
          %147 = vsyncadd %s140, %s146
          %s148 = smul.addr %s22, 4
          %s149 = smul.addr %s144, 4
          %s150 = sadd.s32 %s148, %s149
          %s151 = smul.addr %s150, 64
          %s152 = scalar_lea.hbm %s0, %s151
          %s153 = sshll.u32 %s143, 4
          %s154 = int_to_ptr.vmem [resolvable:$true] %s153
          %159 = dma.hbm_to_vmem [thread:$0]  %s152, 2048, %s154, %s140, 256, 256, 16
        $region24: #{lstm_forward.1} parent=19 // pred_fallthru
          _
      $region20: #{lstm_forward.1} parent=5 // pred_fallthru
        _
      %p160 = scmp.le.s32.totalorder 1, %s15
      %p161 = scmp.lt.s32.totalorder %s15, 3
      %p162 = pnand %p160, %p161
      %p163 = pneg %p162
      // Predicated region
      $region25: #{lstm_forward.1} parent=5 // pred_check
        _
      $region26: #{lstm_forward.1} parent=5 // pred_check_branch
        %165 = sbr.rel (%p162) target = $region28
      $region27: #{lstm_forward.1} parent=5 // pred_region
        %s166 = ssub.s32 %s15, 1
        %s167 = sand.u32 %s42, 1
        %s168 = scalar_lea.sflag [#allocation5], %s167
        %s169 = sand.u32 %s42, 1
        %s170 = smul.addr %s169, 128
        %s171 = scalar_lea.vmem [#allocation4], %s170
        // Predicated region
        $region29: #{lstm_forward.1} parent=27 // pred_check
          %p172 = pneg %p55
        $region30: #{lstm_forward.1} parent=27 // pred_check_branch
          %174 = sbr.rel (%p172) target = $region32
        $region31: #{lstm_forward.1} parent=27 // pred_region
          %175 = dma.done %s168, 2048
        $region32: #{lstm_forward.1} parent=27 // pred_fallthru
          _
        // Predicated region
        $region33: #{lstm_forward.1} parent=27 // pred_check
          %p176 = pneg %p76
        $region34: #{lstm_forward.1} parent=27 // pred_check_branch
          %178 = sbr.rel (%p176) target = $region36
        $region35: #{lstm_forward.1} parent=27 // pred_region
          %179 = dma.done [#allocation8], 4096
        $region36: #{lstm_forward.1} parent=27 // pred_fallthru
          _
        %s180 = sand.u32 %s42, 1
        %s181 = scalar_lea.sflag [#allocation5], %s180
        %s182 = sand.u32 %s42, 1
        %s183 = smul.addr %s182, 128
        %s184 = scalar_lea.vmem [#allocation4], %s183
        %p185 = pneg %p55
        %p186 = pneg %p52
        %p187 = pneg %p76
        %p188 = pneg %p73
        %p189 = pneg %p104
        %p190 = pneg %p101
        %s191 = sand.u32 %s91, 1
        %s192 = scalar_lea.sflag [#allocation6], %s191
        %s193 = sand.u32 %s91, 1
        %s194 = smul.addr %s193, 64
        %s195 = scalar_lea.vmem [#allocation9], %s194
        %s196 = smul.u32 8, %s25
        %s197 = smul.u32 8, %s25
        %p199 = scmp.eq.s32.totalorder %s25, 0
        // Predicated region
        $region37: #{lstm_forward.1} parent=27 // pred_check
          %p200 = pneg %p199
        $region38: #{lstm_forward.1} parent=27 // pred_check_branch
          %202 = sbr.rel (%p200) target = $region40
        $region39: #{lstm_forward.1} parent=27 // pred_region
          %203 = vst [vmem:[#allocation2] sm:$0xff] 0.0
          %204 = vst [vmem:[#allocation3] sm:$0xff] 0.0
        $region40: #{lstm_forward.1} parent=27 // pred_fallthru
          _
        %v205 = vld [vmem:[#allocation7] sm:$0xff]
        %v206 = vld [vmem:[#allocation7 + $0x8] sm:$0xff]
        %v207 = vld [vmem:[#allocation7 + $0x10] sm:$0xff]
        %v208 = vld [vmem:[#allocation7 + $0x18] sm:$0xff]
        %v209 = vld [vmem:[#allocation7 + $0x20] sm:$0xff]
        %v210 = vld [vmem:[#allocation7 + $0x28] sm:$0xff]
        %v211 = vld [vmem:[#allocation7 + $0x30] sm:$0xff]
        %v212 = vld [vmem:[#allocation7 + $0x38] sm:$0xff]
        %v213 = vld [vmem:[#allocation7 + $0x40] sm:$0xff]
        %v214 = vld [vmem:[#allocation7 + $0x48] sm:$0xff]
        %v215 = vld [vmem:[#allocation7 + $0x50] sm:$0xff]
        %v216 = vld [vmem:[#allocation7 + $0x58] sm:$0xff]
        %v217 = vld [vmem:[#allocation7 + $0x60] sm:$0xff]
        %v218 = vld [vmem:[#allocation7 + $0x68] sm:$0xff]
        %v219 = vld [vmem:[#allocation7 + $0x70] sm:$0xff]
        %v220 = vld [vmem:[#allocation7 + $0x78] sm:$0xff]
        %v221 = vld [vmem:[#allocation7 + $0x80] sm:$0xff]
        %v222 = vld [vmem:[#allocation7 + $0x88] sm:$0xff]
        %v223 = vld [vmem:[#allocation7 + $0x90] sm:$0xff]
        %v224 = vld [vmem:[#allocation7 + $0x98] sm:$0xff]
        %v225 = vld [vmem:[#allocation7 + $0xa0] sm:$0xff]
        %v226 = vld [vmem:[#allocation7 + $0xa8] sm:$0xff]
        %v227 = vld [vmem:[#allocation7 + $0xb0] sm:$0xff]
        %v228 = vld [vmem:[#allocation7 + $0xb8] sm:$0xff]
        %v229 = vld [vmem:[#allocation7 + $0xc0] sm:$0xff]
        %v230 = vld [vmem:[#allocation7 + $0xc8] sm:$0xff]
        %v231 = vld [vmem:[#allocation7 + $0xd0] sm:$0xff]
        %v232 = vld [vmem:[#allocation7 + $0xd8] sm:$0xff]
        %v233 = vld [vmem:[#allocation7 + $0xe0] sm:$0xff]
        %v234 = vld [vmem:[#allocation7 + $0xe8] sm:$0xff]
        %v235 = vld [vmem:[#allocation7 + $0xf0] sm:$0xff]
        %v236 = vld [vmem:[#allocation7 + $0xf8] sm:$0xff]
        %v237 = vld [vmem:[#allocation2] sm:$0xff]
        %v238 = vld [vmem:[#allocation3] sm:$0xff]
        %v239 = vld [vmem:[%s171] sm:$0xff]
        %v240 = vld [vmem:[%s171 + $0x8] sm:$0xff]
        %v241 = vunpack.c.l.bf16 %v239
        %v242 = vunpack.c.h.bf16 %v239
        %v243 = vunpack.c.l.bf16 %v240
        %v244 = vunpack.c.h.bf16 %v240
        %v245 = vpack.c.bf16 %v237, %v237
        %v278 = vunpack.c.l.b16 %v205
        %v279 = vunpack.c.h.b16 %v205
        %v280 = vunpack.c.l.b16 %v206
        %v281 = vunpack.c.h.b16 %v206
        %v282 = vunpack.c.l.b16 %v207
        %v283 = vunpack.c.h.b16 %v207
        %v284 = vunpack.c.l.b16 %v208
        %v285 = vunpack.c.h.b16 %v208
        %v286 = vunpack.c.l.b16 %v209
        %v287 = vunpack.c.h.b16 %v209
        %v288 = vunpack.c.l.b16 %v210
        %v289 = vunpack.c.h.b16 %v210
        %v290 = vunpack.c.l.b16 %v211
        %v291 = vunpack.c.h.b16 %v211
        %v292 = vunpack.c.l.b16 %v212
        %v293 = vunpack.c.h.b16 %v212
        %v294 = vunpack.c.l.b16 %v213
        %v295 = vunpack.c.h.b16 %v213
        %v296 = vunpack.c.l.b16 %v214
        %v297 = vunpack.c.h.b16 %v214
        %v298 = vunpack.c.l.b16 %v215
        %v299 = vunpack.c.h.b16 %v215
        %v300 = vunpack.c.l.b16 %v216
        %v301 = vunpack.c.h.b16 %v216
        %v302 = vunpack.c.l.b16 %v217
        %v303 = vunpack.c.h.b16 %v217
        %v304 = vunpack.c.l.b16 %v218
        %v305 = vunpack.c.h.b16 %v218
        %v306 = vunpack.c.l.b16 %v219
        %v307 = vunpack.c.h.b16 %v219
        %v308 = vunpack.c.l.b16 %v220
        %v309 = vunpack.c.h.b16 %v220
        %v310 = vunpack.c.l.b16 %v221
        %v311 = vunpack.c.h.b16 %v221
        %v312 = vunpack.c.l.b16 %v222
        %v313 = vunpack.c.h.b16 %v222
        %v314 = vunpack.c.l.b16 %v223
        %v315 = vunpack.c.h.b16 %v223
        %v316 = vunpack.c.l.b16 %v224
        %v317 = vunpack.c.h.b16 %v224
        %v318 = vunpack.c.l.b16 %v225
        %v319 = vunpack.c.h.b16 %v225
        %v320 = vunpack.c.l.b16 %v226
        %v321 = vunpack.c.h.b16 %v226
        %v322 = vunpack.c.l.b16 %v227
        %v323 = vunpack.c.h.b16 %v227
        %v324 = vunpack.c.l.b16 %v228
        %v325 = vunpack.c.h.b16 %v228
        %v326 = vunpack.c.l.b16 %v229
        %v327 = vunpack.c.h.b16 %v229
        %v328 = vunpack.c.l.b16 %v230
        %v329 = vunpack.c.h.b16 %v230
        %v330 = vunpack.c.l.b16 %v231
        %v331 = vunpack.c.h.b16 %v231
        %v332 = vunpack.c.l.b16 %v232
        %v333 = vunpack.c.h.b16 %v232
        %v334 = vunpack.c.l.b16 %v233
        %v335 = vunpack.c.h.b16 %v233
        %v336 = vunpack.c.l.b16 %v234
        %v337 = vunpack.c.h.b16 %v234
        %v338 = vunpack.c.l.b16 %v235
        %v339 = vunpack.c.h.b16 %v235
        %v340 = vunpack.c.l.b16 %v236
        %v341 = vunpack.c.h.b16 %v236
        %v342 = vpack.c.b16 %v282, %v278
        %v343 = vpack.c.b16 %v283, %v279
        %v344 = vpack.c.b16 %v284, %v280
        %v345 = vpack.c.b16 %v285, %v281
        %v346 = vpack.c.b16 %v290, %v286
        %v347 = vpack.c.b16 %v291, %v287
        %v348 = vpack.c.b16 %v292, %v288
        %v349 = vpack.c.b16 %v293, %v289
        %v350 = vpack.c.b16 %v298, %v294
        %v351 = vpack.c.b16 %v299, %v295
        %v352 = vpack.c.b16 %v300, %v296
        %v353 = vpack.c.b16 %v301, %v297
        %v354 = vpack.c.b16 %v306, %v302
        %v355 = vpack.c.b16 %v307, %v303
        %v356 = vpack.c.b16 %v308, %v304
        %v357 = vpack.c.b16 %v309, %v305
        %v358 = vpack.c.b16 %v314, %v310
        %v359 = vpack.c.b16 %v315, %v311
        %v360 = vpack.c.b16 %v316, %v312
        %v361 = vpack.c.b16 %v317, %v313
        %v362 = vpack.c.b16 %v322, %v318
        %v363 = vpack.c.b16 %v323, %v319
        %v364 = vpack.c.b16 %v324, %v320
        %v365 = vpack.c.b16 %v325, %v321
        %v366 = vpack.c.b16 %v330, %v326
        %v367 = vpack.c.b16 %v331, %v327
        %v368 = vpack.c.b16 %v332, %v328
        %v369 = vpack.c.b16 %v333, %v329
        %v370 = vpack.c.b16 %v338, %v334
        %v371 = vpack.c.b16 %v339, %v335
        %v372 = vpack.c.b16 %v340, %v336
        %v373 = vpack.c.b16 %v341, %v337
        %406 = vmatprep.subr.bf16.mxu0 %v343
        %407 = vmatpush1.bf16.msra.mxu0 %v342
        %408 = vmatprep.subr.bf16.mxu0 %v347
        %409 = vmatpush1.bf16.msra.mxu0 %v346
        %410 = vmatprep.subr.bf16.mxu0 %v351
        %411 = vmatpush1.bf16.msra.mxu0 %v350
        %412 = vmatprep.subr.bf16.mxu0 %v355
        %413 = vmatpush1.bf16.msra.mxu0 %v354
        %414 = vmatprep.subr.bf16.mxu0 %v359
        %415 = vmatpush1.bf16.msra.mxu0 %v358
        %416 = vmatprep.subr.bf16.mxu0 %v363
        %417 = vmatpush1.bf16.msra.mxu0 %v362
        %418 = vmatprep.subr.bf16.mxu0 %v367
        %419 = vmatpush1.bf16.msra.mxu0 %v366
        %420 = vmatprep.subr.bf16.mxu0 %v371
        %421 = vmatpush1.bf16.msra.mxu0 %v370
        %422 = vmatprep.subr.bf16.mxu0 0
        %423 = vmatpush1.bf16.msra.mxu0 0
        %424 = vmatprep.subr.bf16.mxu0 0
        %425 = vmatpush1.bf16.msra.mxu0 0
        %426 = vmatprep.subr.bf16.mxu0 0
        %427 = vmatpush1.bf16.msra.mxu0 0
        %428 = vmatprep.subr.bf16.mxu0 0
        %429 = vmatpush1.bf16.msra.mxu0 0
        %430 = vmatprep.subr.bf16.mxu0 0
        %431 = vmatpush1.bf16.msra.mxu0 0
        %432 = vmatprep.subr.bf16.mxu0 0
        %433 = vmatpush1.bf16.msra.mxu0 0
        %434 = vmatprep.subr.bf16.mxu0 0
        %435 = vmatpush1.bf16.msra.mxu0 0
        %436 = vmatprep.subr.bf16.mxu0 0
        %437 = vmatpush1.bf16.msra.mxu0 0
        %438 = vmatprep.mubr.bf16.mxu0 0
        %439 = vmatmul.mubr.bf16.gmra.mrb[0].mxu0 %v245
        %v440 = vpop.f32.mrb[0].mxu0
        %v441 = vadd.f32 0.0, %v440
        %v442 = vpop.f32.mrb[0].mxu0
        %v443 = vadd.f32 0.0, %v442
        %v444 = vpop.f32.mrb[0].mxu0
        %v445 = vpop.f32.mrb[0].mxu0
        %446 = vdwg.mxu0
        %447 = vmatprep.subr.bf16.mxu0 %v345
        %448 = vmatpush1.bf16.msra.mxu0 %v344
        %449 = vmatprep.subr.bf16.mxu0 %v349
        %450 = vmatpush1.bf16.msra.mxu0 %v348
        %451 = vmatprep.subr.bf16.mxu0 %v353
        %452 = vmatpush1.bf16.msra.mxu0 %v352
        %453 = vmatprep.subr.bf16.mxu0 %v357
        %454 = vmatpush1.bf16.msra.mxu0 %v356
        %455 = vmatprep.subr.bf16.mxu0 %v361
        %456 = vmatpush1.bf16.msra.mxu0 %v360
        %457 = vmatprep.subr.bf16.mxu0 %v365
        %458 = vmatpush1.bf16.msra.mxu0 %v364
        %459 = vmatprep.subr.bf16.mxu0 %v369
        %460 = vmatpush1.bf16.msra.mxu0 %v368
        %461 = vmatprep.subr.bf16.mxu0 %v373
        %462 = vmatpush1.bf16.msra.mxu0 %v372
        %463 = vmatprep.subr.bf16.mxu0 0
        %464 = vmatpush1.bf16.msra.mxu0 0
        %465 = vmatprep.subr.bf16.mxu0 0
        %466 = vmatpush1.bf16.msra.mxu0 0
        %467 = vmatprep.subr.bf16.mxu0 0
        %468 = vmatpush1.bf16.msra.mxu0 0
        %469 = vmatprep.subr.bf16.mxu0 0
        %470 = vmatpush1.bf16.msra.mxu0 0
        %471 = vmatprep.subr.bf16.mxu0 0
        %472 = vmatpush1.bf16.msra.mxu0 0
        %473 = vmatprep.subr.bf16.mxu0 0
        %474 = vmatpush1.bf16.msra.mxu0 0
        %475 = vmatprep.subr.bf16.mxu0 0
        %476 = vmatpush1.bf16.msra.mxu0 0
        %477 = vmatprep.subr.bf16.mxu0 0
        %478 = vmatpush1.bf16.msra.mxu0 0
        %479 = vmatprep.mubr.bf16.mxu0 0
        %480 = vmatmul.mubr.bf16.gmra.mrb[0].mxu0 %v245
        %v481 = vpop.f32.mrb[0].mxu0
        %v482 = vadd.f32 0.0, %v481
        %v483 = vpop.f32.mrb[0].mxu0
        %v484 = vadd.f32 0.0, %v483
        %v485 = vpop.f32.mrb[0].mxu0
        %v486 = vpop.f32.mrb[0].mxu0
        %487 = vdwg.mxu0
        %v488 = vadd.f32 %v241, %v441
        %v489 = vadd.f32 %v242, %v443
        %v490 = vadd.f32 %v243, %v482
        %v491 = vadd.f32 %v244, %v484
        %v492 = vxor.u32 %v488, 2147483648
        %v493 = vxor.u32 %v489, 2147483648
        %v494 = vxor.u32 %v490, 2147483648
        %v495 = vmul.f32 %v492, 1.442695
        %v496 = vpow.pop %v495
        %v497 = vmul.f32 %v493, 1.442695
        %v498 = vpow.pop %v497
        %v499 = vmul.f32 %v494, 1.442695
        %v500 = vpow.pop %v499
        %v501 = vadd.f32 %v496, 1.0
        %v502 = vadd.f32 %v498, 1.0
        %v503 = vadd.f32 %v500, 1.0
        %v504 = vrcp.pop %v501
        %v505 = vmul.f32 1.0, %v504
        %v506 = vrcp.pop %v502
        %v507 = vmul.f32 1.0, %v506
        %v508 = vrcp.pop %v503
        %v509 = vmul.f32 1.0, %v508
        %v510 = vtanh.pop %v491
        %v511 = vmul.f32 %v507, %v238
        %v512 = vmul.f32 %v505, %v510
        %v513 = vadd.f32 %v511, %v512
        %v514 = vtanh.pop %v513
        %v515 = vmul.f32 %v509, %v514
        %516 = vst [vmem:[%s195] sm:$0xff] %v515
        %s517 = scalar_lea.vmem %s171, 16 [#allocation4]
        %v518 = vld [vmem:[%s517] sm:$0xff]
        %v519 = vld [vmem:[%s517 + $0x8] sm:$0xff]
        %v520 = vunpack.c.l.bf16 %v518
        %v521 = vunpack.c.h.bf16 %v518
        %v522 = vunpack.c.l.bf16 %v519
        %v523 = vunpack.c.h.bf16 %v519
        %v524 = vpack.c.bf16 %v515, %v515
        %525 = vmatprep.subr.bf16.mxu0 %v343
        %526 = vmatpush1.bf16.msra.mxu0 %v342
        %527 = vmatprep.subr.bf16.mxu0 %v347
        %528 = vmatpush1.bf16.msra.mxu0 %v346
        %529 = vmatprep.subr.bf16.mxu0 %v351
        %530 = vmatpush1.bf16.msra.mxu0 %v350
        %531 = vmatprep.subr.bf16.mxu0 %v355
        %532 = vmatpush1.bf16.msra.mxu0 %v354
        %533 = vmatprep.subr.bf16.mxu0 %v359
        %534 = vmatpush1.bf16.msra.mxu0 %v358
        %535 = vmatprep.subr.bf16.mxu0 %v363
        %536 = vmatpush1.bf16.msra.mxu0 %v362
        %537 = vmatprep.subr.bf16.mxu0 %v367
        %538 = vmatpush1.bf16.msra.mxu0 %v366
        %539 = vmatprep.subr.bf16.mxu0 %v371
        %540 = vmatpush1.bf16.msra.mxu0 %v370
        %541 = vmatprep.subr.bf16.mxu0 0
        %542 = vmatpush1.bf16.msra.mxu0 0
        %543 = vmatprep.subr.bf16.mxu0 0
        %544 = vmatpush1.bf16.msra.mxu0 0
        %545 = vmatprep.subr.bf16.mxu0 0
        %546 = vmatpush1.bf16.msra.mxu0 0
        %547 = vmatprep.subr.bf16.mxu0 0
        %548 = vmatpush1.bf16.msra.mxu0 0
        %549 = vmatprep.subr.bf16.mxu0 0
        %550 = vmatpush1.bf16.msra.mxu0 0
        %551 = vmatprep.subr.bf16.mxu0 0
        %552 = vmatpush1.bf16.msra.mxu0 0
        %553 = vmatprep.subr.bf16.mxu0 0
        %554 = vmatpush1.bf16.msra.mxu0 0
        %555 = vmatprep.subr.bf16.mxu0 0
        %556 = vmatpush1.bf16.msra.mxu0 0
        %557 = vmatprep.mubr.bf16.mxu0 0
        %558 = vmatmul.mubr.bf16.gmra.mrb[0].mxu0 %v524
        %v559 = vpop.f32.mrb[0].mxu0
        %v560 = vadd.f32 0.0, %v559
        %v561 = vpop.f32.mrb[0].mxu0
        %v562 = vadd.f32 0.0, %v561
        %v563 = vpop.f32.mrb[0].mxu0
        %v564 = vpop.f32.mrb[0].mxu0
        %565 = vdwg.mxu0
        %566 = vmatprep.subr.bf16.mxu0 %v345
        %567 = vmatpush1.bf16.msra.mxu0 %v344
        %568 = vmatprep.subr.bf16.mxu0 %v349
        %569 = vmatpush1.bf16.msra.mxu0 %v348
        %570 = vmatprep.subr.bf16.mxu0 %v353
        %571 = vmatpush1.bf16.msra.mxu0 %v352
        %572 = vmatprep.subr.bf16.mxu0 %v357
        %573 = vmatpush1.bf16.msra.mxu0 %v356
        %574 = vmatprep.subr.bf16.mxu0 %v361
        %575 = vmatpush1.bf16.msra.mxu0 %v360
        %576 = vmatprep.subr.bf16.mxu0 %v365
        %577 = vmatpush1.bf16.msra.mxu0 %v364
        %578 = vmatprep.subr.bf16.mxu0 %v369
        %579 = vmatpush1.bf16.msra.mxu0 %v368
        %580 = vmatprep.subr.bf16.mxu0 %v373
        %581 = vmatpush1.bf16.msra.mxu0 %v372
        %582 = vmatprep.subr.bf16.mxu0 0
        %583 = vmatpush1.bf16.msra.mxu0 0
        %584 = vmatprep.subr.bf16.mxu0 0
        %585 = vmatpush1.bf16.msra.mxu0 0
        %586 = vmatprep.subr.bf16.mxu0 0
        %587 = vmatpush1.bf16.msra.mxu0 0
        %588 = vmatprep.subr.bf16.mxu0 0
        %589 = vmatpush1.bf16.msra.mxu0 0
        %590 = vmatprep.subr.bf16.mxu0 0
        %591 = vmatpush1.bf16.msra.mxu0 0
        %592 = vmatprep.subr.bf16.mxu0 0
        %593 = vmatpush1.bf16.msra.mxu0 0
        %594 = vmatprep.subr.bf16.mxu0 0
        %595 = vmatpush1.bf16.msra.mxu0 0
        %596 = vmatprep.subr.bf16.mxu0 0
        %597 = vmatpush1.bf16.msra.mxu0 0
        %598 = vmatprep.mubr.bf16.mxu0 0
        %599 = vmatmul.mubr.bf16.gmra.mrb[0].mxu0 %v524
        %v600 = vpop.f32.mrb[0].mxu0
        %v601 = vadd.f32 0.0, %v600
        %v602 = vpop.f32.mrb[0].mxu0
        %v603 = vadd.f32 0.0, %v602
        %v604 = vpop.f32.mrb[0].mxu0
        %v605 = vpop.f32.mrb[0].mxu0
        %606 = vdwg.mxu0
        %v607 = vadd.f32 %v520, %v560
        %v608 = vadd.f32 %v521, %v562
        %v609 = vadd.f32 %v522, %v601
        %v610 = vadd.f32 %v523, %v603
        %v611 = vxor.u32 %v607, 2147483648
        %v612 = vxor.u32 %v608, 2147483648
        %v613 = vxor.u32 %v609, 2147483648
        %v614 = vmul.f32 %v611, 1.442695
        %v615 = vpow.pop %v614
        %v616 = vmul.f32 %v612, 1.442695
        %v617 = vpow.pop %v616
        %v618 = vmul.f32 %v613, 1.442695
        %v619 = vpow.pop %v618
        %v620 = vadd.f32 %v615, 1.0
        %v621 = vadd.f32 %v617, 1.0
        %v622 = vadd.f32 %v619, 1.0
        %v623 = vrcp.pop %v620
        %v624 = vmul.f32 1.0, %v623
        %v625 = vrcp.pop %v621
        %v626 = vmul.f32 1.0, %v625
        %v627 = vrcp.pop %v622
        %v628 = vmul.f32 1.0, %v627
        %v629 = vtanh.pop %v610
        %v630 = vmul.f32 %v626, %v513
        %v631 = vmul.f32 %v624, %v629
        %v632 = vadd.f32 %v630, %v631
        %v633 = vtanh.pop %v632
        %v634 = vmul.f32 %v628, %v633
        %s635 = scalar_lea.vmem %s195, 8 [#allocation9]
        %636 = vst [vmem:[%s635] sm:$0xff] %v634
        %s637 = scalar_lea.vmem %s171, 32 [#allocation4]
        %v638 = vld [vmem:[%s637] sm:$0xff]
        %v639 = vld [vmem:[%s637 + $0x8] sm:$0xff]
        %v640 = vunpack.c.l.bf16 %v638
        %v641 = vunpack.c.h.bf16 %v638
        %v642 = vunpack.c.l.bf16 %v639
        %v643 = vunpack.c.h.bf16 %v639
        %v644 = vpack.c.bf16 %v634, %v634
        %645 = vmatprep.subr.bf16.mxu0 %v343
        %646 = vmatpush1.bf16.msra.mxu0 %v342
        %647 = vmatprep.subr.bf16.mxu0 %v347
        %648 = vmatpush1.bf16.msra.mxu0 %v346
        %649 = vmatprep.subr.bf16.mxu0 %v351
        %650 = vmatpush1.bf16.msra.mxu0 %v350
        %651 = vmatprep.subr.bf16.mxu0 %v355
        %652 = vmatpush1.bf16.msra.mxu0 %v354
        %653 = vmatprep.subr.bf16.mxu0 %v359
        %654 = vmatpush1.bf16.msra.mxu0 %v358
        %655 = vmatprep.subr.bf16.mxu0 %v363
        %656 = vmatpush1.bf16.msra.mxu0 %v362
        %657 = vmatprep.subr.bf16.mxu0 %v367
        %658 = vmatpush1.bf16.msra.mxu0 %v366
        %659 = vmatprep.subr.bf16.mxu0 %v371
        %660 = vmatpush1.bf16.msra.mxu0 %v370
        %661 = vmatprep.subr.bf16.mxu0 0
        %662 = vmatpush1.bf16.msra.mxu0 0
        %663 = vmatprep.subr.bf16.mxu0 0
        %664 = vmatpush1.bf16.msra.mxu0 0
        %665 = vmatprep.subr.bf16.mxu0 0
        %666 = vmatpush1.bf16.msra.mxu0 0
        %667 = vmatprep.subr.bf16.mxu0 0
        %668 = vmatpush1.bf16.msra.mxu0 0
        %669 = vmatprep.subr.bf16.mxu0 0
        %670 = vmatpush1.bf16.msra.mxu0 0
        %671 = vmatprep.subr.bf16.mxu0 0
        %672 = vmatpush1.bf16.msra.mxu0 0
        %673 = vmatprep.subr.bf16.mxu0 0
        %674 = vmatpush1.bf16.msra.mxu0 0
        %675 = vmatprep.subr.bf16.mxu0 0
        %676 = vmatpush1.bf16.msra.mxu0 0
        %677 = vmatprep.mubr.bf16.mxu0 0
        %678 = vmatmul.mubr.bf16.gmra.mrb[0].mxu0 %v644
        %v679 = vpop.f32.mrb[0].mxu0
        %v680 = vadd.f32 0.0, %v679
        %v681 = vpop.f32.mrb[0].mxu0
        %v682 = vadd.f32 0.0, %v681
        %v683 = vpop.f32.mrb[0].mxu0
        %v684 = vpop.f32.mrb[0].mxu0
        %685 = vdwg.mxu0
        %686 = vmatprep.subr.bf16.mxu0 %v345
        %687 = vmatpush1.bf16.msra.mxu0 %v344
        %688 = vmatprep.subr.bf16.mxu0 %v349
        %689 = vmatpush1.bf16.msra.mxu0 %v348
        %690 = vmatprep.subr.bf16.mxu0 %v353
        %691 = vmatpush1.bf16.msra.mxu0 %v352
        %692 = vmatprep.subr.bf16.mxu0 %v357
        %693 = vmatpush1.bf16.msra.mxu0 %v356
        %694 = vmatprep.subr.bf16.mxu0 %v361
        %695 = vmatpush1.bf16.msra.mxu0 %v360
        %696 = vmatprep.subr.bf16.mxu0 %v365
        %697 = vmatpush1.bf16.msra.mxu0 %v364
        %698 = vmatprep.subr.bf16.mxu0 %v369
        %699 = vmatpush1.bf16.msra.mxu0 %v368
        %700 = vmatprep.subr.bf16.mxu0 %v373
        %701 = vmatpush1.bf16.msra.mxu0 %v372
        %702 = vmatprep.subr.bf16.mxu0 0
        %703 = vmatpush1.bf16.msra.mxu0 0
        %704 = vmatprep.subr.bf16.mxu0 0
        %705 = vmatpush1.bf16.msra.mxu0 0
        %706 = vmatprep.subr.bf16.mxu0 0
        %707 = vmatpush1.bf16.msra.mxu0 0
        %708 = vmatprep.subr.bf16.mxu0 0
        %709 = vmatpush1.bf16.msra.mxu0 0
        %710 = vmatprep.subr.bf16.mxu0 0
        %711 = vmatpush1.bf16.msra.mxu0 0
        %712 = vmatprep.subr.bf16.mxu0 0
        %713 = vmatpush1.bf16.msra.mxu0 0
        %714 = vmatprep.subr.bf16.mxu0 0
        %715 = vmatpush1.bf16.msra.mxu0 0
        %716 = vmatprep.subr.bf16.mxu0 0
        %717 = vmatpush1.bf16.msra.mxu0 0
        %718 = vmatprep.mubr.bf16.mxu0 0
        %719 = vmatmul.mubr.bf16.gmra.mrb[0].mxu0 %v644
        %v720 = vpop.f32.mrb[0].mxu0
        %v721 = vadd.f32 0.0, %v720
        %v722 = vpop.f32.mrb[0].mxu0
        %v723 = vadd.f32 0.0, %v722
        %v724 = vpop.f32.mrb[0].mxu0
        %v725 = vpop.f32.mrb[0].mxu0
        %726 = vdwg.mxu0
        %v727 = vadd.f32 %v640, %v680
        %v728 = vadd.f32 %v641, %v682
        %v729 = vadd.f32 %v642, %v721
        %v730 = vadd.f32 %v643, %v723
        %v731 = vxor.u32 %v727, 2147483648
        %v732 = vxor.u32 %v728, 2147483648
        %v733 = vxor.u32 %v729, 2147483648
        %v734 = vmul.f32 %v731, 1.442695
        %v735 = vpow.pop %v734
        %v736 = vmul.f32 %v732, 1.442695
        %v737 = vpow.pop %v736
        %v738 = vmul.f32 %v733, 1.442695
        %v739 = vpow.pop %v738
        %v740 = vadd.f32 %v735, 1.0
        %v741 = vadd.f32 %v737, 1.0
        %v742 = vadd.f32 %v739, 1.0
        %v743 = vrcp.pop %v740
        %v744 = vmul.f32 1.0, %v743
        %v745 = vrcp.pop %v741
        %v746 = vmul.f32 1.0, %v745
        %v747 = vrcp.pop %v742
        %v748 = vmul.f32 1.0, %v747
        %v749 = vtanh.pop %v730
        %v750 = vmul.f32 %v746, %v632
        %v751 = vmul.f32 %v744, %v749
        %v752 = vadd.f32 %v750, %v751
        %v753 = vtanh.pop %v752
        %v754 = vmul.f32 %v748, %v753
        %s755 = scalar_lea.vmem %s195, 16 [#allocation9]
        %756 = vst [vmem:[%s755] sm:$0xff] %v754
        %s757 = scalar_lea.vmem %s171, 48 [#allocation4]
        %v758 = vld [vmem:[%s757] sm:$0xff]
        %v759 = vld [vmem:[%s757 + $0x8] sm:$0xff]
        %v760 = vunpack.c.l.bf16 %v758
        %v761 = vunpack.c.h.bf16 %v758
        %v762 = vunpack.c.l.bf16 %v759
        %v763 = vunpack.c.h.bf16 %v759
        %v764 = vpack.c.bf16 %v754, %v754
        %765 = vmatprep.subr.bf16.mxu0 %v343
        %766 = vmatpush1.bf16.msra.mxu0 %v342
        %767 = vmatprep.subr.bf16.mxu0 %v347
        %768 = vmatpush1.bf16.msra.mxu0 %v346
        %769 = vmatprep.subr.bf16.mxu0 %v351
        %770 = vmatpush1.bf16.msra.mxu0 %v350
        %771 = vmatprep.subr.bf16.mxu0 %v355
        %772 = vmatpush1.bf16.msra.mxu0 %v354
        %773 = vmatprep.subr.bf16.mxu0 %v359
        %774 = vmatpush1.bf16.msra.mxu0 %v358
        %775 = vmatprep.subr.bf16.mxu0 %v363
        %776 = vmatpush1.bf16.msra.mxu0 %v362
        %777 = vmatprep.subr.bf16.mxu0 %v367
        %778 = vmatpush1.bf16.msra.mxu0 %v366
        %779 = vmatprep.subr.bf16.mxu0 %v371
        %780 = vmatpush1.bf16.msra.mxu0 %v370
        %781 = vmatprep.subr.bf16.mxu0 0
        %782 = vmatpush1.bf16.msra.mxu0 0
        %783 = vmatprep.subr.bf16.mxu0 0
        %784 = vmatpush1.bf16.msra.mxu0 0
        %785 = vmatprep.subr.bf16.mxu0 0
        %786 = vmatpush1.bf16.msra.mxu0 0
        %787 = vmatprep.subr.bf16.mxu0 0
        %788 = vmatpush1.bf16.msra.mxu0 0
        %789 = vmatprep.subr.bf16.mxu0 0
        %790 = vmatpush1.bf16.msra.mxu0 0
        %791 = vmatprep.subr.bf16.mxu0 0
        %792 = vmatpush1.bf16.msra.mxu0 0
        %793 = vmatprep.subr.bf16.mxu0 0
        %794 = vmatpush1.bf16.msra.mxu0 0
        %795 = vmatprep.subr.bf16.mxu0 0
        %796 = vmatpush1.bf16.msra.mxu0 0
        %797 = vmatprep.mubr.bf16.mxu0 0
        %798 = vmatmul.mubr.bf16.gmra.mrb[0].mxu0 %v764
        %v799 = vpop.f32.mrb[0].mxu0
        %v800 = vadd.f32 0.0, %v799
        %v801 = vpop.f32.mrb[0].mxu0
        %v802 = vadd.f32 0.0, %v801
        %v803 = vpop.f32.mrb[0].mxu0
        %v804 = vpop.f32.mrb[0].mxu0
        %805 = vdwg.mxu0
        %806 = vmatprep.subr.bf16.mxu0 %v345
        %807 = vmatpush1.bf16.msra.mxu0 %v344
        %808 = vmatprep.subr.bf16.mxu0 %v349
        %809 = vmatpush1.bf16.msra.mxu0 %v348
        %810 = vmatprep.subr.bf16.mxu0 %v353
        %811 = vmatpush1.bf16.msra.mxu0 %v352
        %812 = vmatprep.subr.bf16.mxu0 %v357
        %813 = vmatpush1.bf16.msra.mxu0 %v356
        %814 = vmatprep.subr.bf16.mxu0 %v361
        %815 = vmatpush1.bf16.msra.mxu0 %v360
        %816 = vmatprep.subr.bf16.mxu0 %v365
        %817 = vmatpush1.bf16.msra.mxu0 %v364
        %818 = vmatprep.subr.bf16.mxu0 %v369
        %819 = vmatpush1.bf16.msra.mxu0 %v368
        %820 = vmatprep.subr.bf16.mxu0 %v373
        %821 = vmatpush1.bf16.msra.mxu0 %v372
        %822 = vmatprep.subr.bf16.mxu0 0
        %823 = vmatpush1.bf16.msra.mxu0 0
        %824 = vmatprep.subr.bf16.mxu0 0
        %825 = vmatpush1.bf16.msra.mxu0 0
        %826 = vmatprep.subr.bf16.mxu0 0
        %827 = vmatpush1.bf16.msra.mxu0 0
        %828 = vmatprep.subr.bf16.mxu0 0
        %829 = vmatpush1.bf16.msra.mxu0 0
        %830 = vmatprep.subr.bf16.mxu0 0
        %831 = vmatpush1.bf16.msra.mxu0 0
        %832 = vmatprep.subr.bf16.mxu0 0
        %833 = vmatpush1.bf16.msra.mxu0 0
        %834 = vmatprep.subr.bf16.mxu0 0
        %835 = vmatpush1.bf16.msra.mxu0 0
        %836 = vmatprep.subr.bf16.mxu0 0
        %837 = vmatpush1.bf16.msra.mxu0 0
        %838 = vmatprep.mubr.bf16.mxu0 0
        %839 = vmatmul.mubr.bf16.gmra.mrb[0].mxu0 %v764
        %v840 = vpop.f32.mrb[0].mxu0
        %v841 = vadd.f32 0.0, %v840
        %v842 = vpop.f32.mrb[0].mxu0
        %v843 = vadd.f32 0.0, %v842
        %v844 = vpop.f32.mrb[0].mxu0
        %v845 = vpop.f32.mrb[0].mxu0
        %846 = vdwg.mxu0
        %v847 = vadd.f32 %v760, %v800
        %v848 = vadd.f32 %v761, %v802
        %v849 = vadd.f32 %v762, %v841
        %v850 = vadd.f32 %v763, %v843
        %v851 = vxor.u32 %v847, 2147483648
        %v852 = vxor.u32 %v848, 2147483648
        %v853 = vxor.u32 %v849, 2147483648
        %v854 = vmul.f32 %v851, 1.442695
        %v855 = vpow.pop %v854
        %v856 = vmul.f32 %v852, 1.442695
        %v857 = vpow.pop %v856
        %v858 = vmul.f32 %v853, 1.442695
        %v859 = vpow.pop %v858
        %v860 = vadd.f32 %v855, 1.0
        %v861 = vadd.f32 %v857, 1.0
        %v862 = vadd.f32 %v859, 1.0
        %v863 = vrcp.pop %v860
        %v864 = vmul.f32 1.0, %v863
        %v865 = vrcp.pop %v861
        %v866 = vmul.f32 1.0, %v865
        %v867 = vrcp.pop %v862
        %v868 = vmul.f32 1.0, %v867
        %v869 = vtanh.pop %v850
        %v870 = vmul.f32 %v866, %v752
        %v871 = vmul.f32 %v864, %v869
        %v872 = vadd.f32 %v870, %v871
        %v873 = vtanh.pop %v872
        %v874 = vmul.f32 %v868, %v873
        %s875 = scalar_lea.vmem %s195, 24 [#allocation9]
        %876 = vst [vmem:[%s875] sm:$0xff] %v874
        %s877 = scalar_lea.vmem %s171, 64 [#allocation4]
        %v878 = vld [vmem:[%s877] sm:$0xff]
        %v879 = vld [vmem:[%s877 + $0x8] sm:$0xff]
        %v880 = vunpack.c.l.bf16 %v878
        %v881 = vunpack.c.h.bf16 %v878
        %v882 = vunpack.c.l.bf16 %v879
        %v883 = vunpack.c.h.bf16 %v879
        %v884 = vpack.c.bf16 %v874, %v874
        %885 = vmatprep.subr.bf16.mxu0 %v343
        %886 = vmatpush1.bf16.msra.mxu0 %v342
        %887 = vmatprep.subr.bf16.mxu0 %v347
        %888 = vmatpush1.bf16.msra.mxu0 %v346
        %889 = vmatprep.subr.bf16.mxu0 %v351
        %890 = vmatpush1.bf16.msra.mxu0 %v350
        %891 = vmatprep.subr.bf16.mxu0 %v355
        %892 = vmatpush1.bf16.msra.mxu0 %v354
        %893 = vmatprep.subr.bf16.mxu0 %v359
        %894 = vmatpush1.bf16.msra.mxu0 %v358
        %895 = vmatprep.subr.bf16.mxu0 %v363
        %896 = vmatpush1.bf16.msra.mxu0 %v362
        %897 = vmatprep.subr.bf16.mxu0 %v367
        %898 = vmatpush1.bf16.msra.mxu0 %v366
        %899 = vmatprep.subr.bf16.mxu0 %v371
        %900 = vmatpush1.bf16.msra.mxu0 %v370
        %901 = vmatprep.subr.bf16.mxu0 0
        %902 = vmatpush1.bf16.msra.mxu0 0
        %903 = vmatprep.subr.bf16.mxu0 0
        %904 = vmatpush1.bf16.msra.mxu0 0
        %905 = vmatprep.subr.bf16.mxu0 0
        %906 = vmatpush1.bf16.msra.mxu0 0
        %907 = vmatprep.subr.bf16.mxu0 0
        %908 = vmatpush1.bf16.msra.mxu0 0
        %909 = vmatprep.subr.bf16.mxu0 0
        %910 = vmatpush1.bf16.msra.mxu0 0
        %911 = vmatprep.subr.bf16.mxu0 0
        %912 = vmatpush1.bf16.msra.mxu0 0
        %913 = vmatprep.subr.bf16.mxu0 0
        %914 = vmatpush1.bf16.msra.mxu0 0
        %915 = vmatprep.subr.bf16.mxu0 0
        %916 = vmatpush1.bf16.msra.mxu0 0
        %917 = vmatprep.mubr.bf16.mxu0 0
        %918 = vmatmul.mubr.bf16.gmra.mrb[0].mxu0 %v884
        %v919 = vpop.f32.mrb[0].mxu0
        %v920 = vadd.f32 0.0, %v919
        %v921 = vpop.f32.mrb[0].mxu0
        %v922 = vadd.f32 0.0, %v921
        %v923 = vpop.f32.mrb[0].mxu0
        %v924 = vpop.f32.mrb[0].mxu0
        %925 = vdwg.mxu0
        %926 = vmatprep.subr.bf16.mxu0 %v345
        %927 = vmatpush1.bf16.msra.mxu0 %v344
        %928 = vmatprep.subr.bf16.mxu0 %v349
        %929 = vmatpush1.bf16.msra.mxu0 %v348
        %930 = vmatprep.subr.bf16.mxu0 %v353
        %931 = vmatpush1.bf16.msra.mxu0 %v352
        %932 = vmatprep.subr.bf16.mxu0 %v357
        %933 = vmatpush1.bf16.msra.mxu0 %v356
        %934 = vmatprep.subr.bf16.mxu0 %v361
        %935 = vmatpush1.bf16.msra.mxu0 %v360
        %936 = vmatprep.subr.bf16.mxu0 %v365
        %937 = vmatpush1.bf16.msra.mxu0 %v364
        %938 = vmatprep.subr.bf16.mxu0 %v369
        %939 = vmatpush1.bf16.msra.mxu0 %v368
        %940 = vmatprep.subr.bf16.mxu0 %v373
        %941 = vmatpush1.bf16.msra.mxu0 %v372
        %942 = vmatprep.subr.bf16.mxu0 0
        %943 = vmatpush1.bf16.msra.mxu0 0
        %944 = vmatprep.subr.bf16.mxu0 0
        %945 = vmatpush1.bf16.msra.mxu0 0
        %946 = vmatprep.subr.bf16.mxu0 0
        %947 = vmatpush1.bf16.msra.mxu0 0
        %948 = vmatprep.subr.bf16.mxu0 0
        %949 = vmatpush1.bf16.msra.mxu0 0
        %950 = vmatprep.subr.bf16.mxu0 0
        %951 = vmatpush1.bf16.msra.mxu0 0
        %952 = vmatprep.subr.bf16.mxu0 0
        %953 = vmatpush1.bf16.msra.mxu0 0
        %954 = vmatprep.subr.bf16.mxu0 0
        %955 = vmatpush1.bf16.msra.mxu0 0
        %956 = vmatprep.subr.bf16.mxu0 0
        %957 = vmatpush1.bf16.msra.mxu0 0
        %958 = vmatprep.mubr.bf16.mxu0 0
        %959 = vmatmul.mubr.bf16.gmra.mrb[0].mxu0 %v884
        %v960 = vpop.f32.mrb[0].mxu0
        %v961 = vadd.f32 0.0, %v960
        %v962 = vpop.f32.mrb[0].mxu0
        %v963 = vadd.f32 0.0, %v962
        %v964 = vpop.f32.mrb[0].mxu0
        %v965 = vpop.f32.mrb[0].mxu0
        %966 = vdwg.mxu0
        %v967 = vadd.f32 %v880, %v920
        %v968 = vadd.f32 %v881, %v922
        %v969 = vadd.f32 %v882, %v961
        %v970 = vadd.f32 %v883, %v963
        %v971 = vxor.u32 %v967, 2147483648
        %v972 = vxor.u32 %v968, 2147483648
        %v973 = vxor.u32 %v969, 2147483648
        %v974 = vmul.f32 %v971, 1.442695
        %v975 = vpow.pop %v974
        %v976 = vmul.f32 %v972, 1.442695
        %v977 = vpow.pop %v976
        %v978 = vmul.f32 %v973, 1.442695
        %v979 = vpow.pop %v978
        %v980 = vadd.f32 %v975, 1.0
        %v981 = vadd.f32 %v977, 1.0
        %v982 = vadd.f32 %v979, 1.0
        %v983 = vrcp.pop %v980
        %v984 = vmul.f32 1.0, %v983
        %v985 = vrcp.pop %v981
        %v986 = vmul.f32 1.0, %v985
        %v987 = vrcp.pop %v982
        %v988 = vmul.f32 1.0, %v987
        %v989 = vtanh.pop %v970
        %v990 = vmul.f32 %v986, %v872
        %v991 = vmul.f32 %v984, %v989
        %v992 = vadd.f32 %v990, %v991
        %v993 = vtanh.pop %v992
        %v994 = vmul.f32 %v988, %v993
        %s995 = scalar_lea.vmem %s195, 32 [#allocation9]
        %996 = vst [vmem:[%s995] sm:$0xff] %v994
        %s997 = scalar_lea.vmem %s171, 80 [#allocation4]
        %v998 = vld [vmem:[%s997] sm:$0xff]
        %v999 = vld [vmem:[%s997 + $0x8] sm:$0xff]
        %v1000 = vunpack.c.l.bf16 %v998
        %v1001 = vunpack.c.h.bf16 %v998
        %v1002 = vunpack.c.l.bf16 %v999
        %v1003 = vunpack.c.h.bf16 %v999
        %v1004 = vpack.c.bf16 %v994, %v994
        %1005 = vmatprep.subr.bf16.mxu0 %v343
        %1006 = vmatpush1.bf16.msra.mxu0 %v342
        %1007 = vmatprep.subr.bf16.mxu0 %v347
        %1008 = vmatpush1.bf16.msra.mxu0 %v346
        %1009 = vmatprep.subr.bf16.mxu0 %v351
        %1010 = vmatpush1.bf16.msra.mxu0 %v350
        %1011 = vmatprep.subr.bf16.mxu0 %v355
        %1012 = vmatpush1.bf16.msra.mxu0 %v354
        %1013 = vmatprep.subr.bf16.mxu0 %v359
        %1014 = vmatpush1.bf16.msra.mxu0 %v358
        %1015 = vmatprep.subr.bf16.mxu0 %v363
        %1016 = vmatpush1.bf16.msra.mxu0 %v362
        %1017 = vmatprep.subr.bf16.mxu0 %v367
        %1018 = vmatpush1.bf16.msra.mxu0 %v366
        %1019 = vmatprep.subr.bf16.mxu0 %v371
        %1020 = vmatpush1.bf16.msra.mxu0 %v370
        %1021 = vmatprep.subr.bf16.mxu0 0
        %1022 = vmatpush1.bf16.msra.mxu0 0
        %1023 = vmatprep.subr.bf16.mxu0 0
        %1024 = vmatpush1.bf16.msra.mxu0 0
        %1025 = vmatprep.subr.bf16.mxu0 0
        %1026 = vmatpush1.bf16.msra.mxu0 0
        %1027 = vmatprep.subr.bf16.mxu0 0
        %1028 = vmatpush1.bf16.msra.mxu0 0
        %1029 = vmatprep.subr.bf16.mxu0 0
        %1030 = vmatpush1.bf16.msra.mxu0 0
        %1031 = vmatprep.subr.bf16.mxu0 0
        %1032 = vmatpush1.bf16.msra.mxu0 0
        %1033 = vmatprep.subr.bf16.mxu0 0
        %1034 = vmatpush1.bf16.msra.mxu0 0
        %1035 = vmatprep.subr.bf16.mxu0 0
        %1036 = vmatpush1.bf16.msra.mxu0 0
        %1037 = vmatprep.mubr.bf16.mxu0 0
        %1038 = vmatmul.mubr.bf16.gmra.mrb[0].mxu0 %v1004
        %v1039 = vpop.f32.mrb[0].mxu0
        %v1040 = vadd.f32 0.0, %v1039
        %v1041 = vpop.f32.mrb[0].mxu0
        %v1042 = vadd.f32 0.0, %v1041
        %v1043 = vpop.f32.mrb[0].mxu0
        %v1044 = vpop.f32.mrb[0].mxu0
        %1045 = vdwg.mxu0
        %1046 = vmatprep.subr.bf16.mxu0 %v345
        %1047 = vmatpush1.bf16.msra.mxu0 %v344
        %1048 = vmatprep.subr.bf16.mxu0 %v349
        %1049 = vmatpush1.bf16.msra.mxu0 %v348
        %1050 = vmatprep.subr.bf16.mxu0 %v353
        %1051 = vmatpush1.bf16.msra.mxu0 %v352
        %1052 = vmatprep.subr.bf16.mxu0 %v357
        %1053 = vmatpush1.bf16.msra.mxu0 %v356
        %1054 = vmatprep.subr.bf16.mxu0 %v361
        %1055 = vmatpush1.bf16.msra.mxu0 %v360
        %1056 = vmatprep.subr.bf16.mxu0 %v365
        %1057 = vmatpush1.bf16.msra.mxu0 %v364
        %1058 = vmatprep.subr.bf16.mxu0 %v369
        %1059 = vmatpush1.bf16.msra.mxu0 %v368
        %1060 = vmatprep.subr.bf16.mxu0 %v373
        %1061 = vmatpush1.bf16.msra.mxu0 %v372
        %1062 = vmatprep.subr.bf16.mxu0 0
        %1063 = vmatpush1.bf16.msra.mxu0 0
        %1064 = vmatprep.subr.bf16.mxu0 0
        %1065 = vmatpush1.bf16.msra.mxu0 0
        %1066 = vmatprep.subr.bf16.mxu0 0
        %1067 = vmatpush1.bf16.msra.mxu0 0
        %1068 = vmatprep.subr.bf16.mxu0 0
        %1069 = vmatpush1.bf16.msra.mxu0 0
        %1070 = vmatprep.subr.bf16.mxu0 0
        %1071 = vmatpush1.bf16.msra.mxu0 0
        %1072 = vmatprep.subr.bf16.mxu0 0
        %1073 = vmatpush1.bf16.msra.mxu0 0
        %1074 = vmatprep.subr.bf16.mxu0 0
        %1075 = vmatpush1.bf16.msra.mxu0 0
        %1076 = vmatprep.subr.bf16.mxu0 0
        %1077 = vmatpush1.bf16.msra.mxu0 0
        %1078 = vmatprep.mubr.bf16.mxu0 0
        %1079 = vmatmul.mubr.bf16.gmra.mrb[0].mxu0 %v1004
        %v1080 = vpop.f32.mrb[0].mxu0
        %v1081 = vadd.f32 0.0, %v1080
        %v1082 = vpop.f32.mrb[0].mxu0
        %v1083 = vadd.f32 0.0, %v1082
        %v1084 = vpop.f32.mrb[0].mxu0
        %v1085 = vpop.f32.mrb[0].mxu0
        %1086 = vdwg.mxu0
        %v1087 = vadd.f32 %v1000, %v1040
        %v1088 = vadd.f32 %v1001, %v1042
        %v1089 = vadd.f32 %v1002, %v1081
        %v1090 = vadd.f32 %v1003, %v1083
        %v1091 = vxor.u32 %v1087, 2147483648
        %v1092 = vxor.u32 %v1088, 2147483648
        %v1093 = vxor.u32 %v1089, 2147483648
        %v1094 = vmul.f32 %v1091, 1.442695
        %v1095 = vpow.pop %v1094
        %v1096 = vmul.f32 %v1092, 1.442695
        %v1097 = vpow.pop %v1096
        %v1098 = vmul.f32 %v1093, 1.442695
        %v1099 = vpow.pop %v1098
        %v1100 = vadd.f32 %v1095, 1.0
        %v1101 = vadd.f32 %v1097, 1.0
        %v1102 = vadd.f32 %v1099, 1.0
        %v1103 = vrcp.pop %v1100
        %v1104 = vmul.f32 1.0, %v1103
        %v1105 = vrcp.pop %v1101
        %v1106 = vmul.f32 1.0, %v1105
        %v1107 = vrcp.pop %v1102
        %v1108 = vmul.f32 1.0, %v1107
        %v1109 = vtanh.pop %v1090
        %v1110 = vmul.f32 %v1106, %v992
        %v1111 = vmul.f32 %v1104, %v1109
        %v1112 = vadd.f32 %v1110, %v1111
        %v1113 = vtanh.pop %v1112
        %v1114 = vmul.f32 %v1108, %v1113
        %s1115 = scalar_lea.vmem %s195, 40 [#allocation9]
        %1116 = vst [vmem:[%s1115] sm:$0xff] %v1114
        %s1117 = scalar_lea.vmem %s171, 96 [#allocation4]
        %v1118 = vld [vmem:[%s1117] sm:$0xff]
        %v1119 = vld [vmem:[%s1117 + $0x8] sm:$0xff]
        %v1120 = vunpack.c.l.bf16 %v1118
        %v1121 = vunpack.c.h.bf16 %v1118
        %v1122 = vunpack.c.l.bf16 %v1119
        %v1123 = vunpack.c.h.bf16 %v1119
        %v1124 = vpack.c.bf16 %v1114, %v1114
        %1125 = vmatprep.subr.bf16.mxu0 %v343
        %1126 = vmatpush1.bf16.msra.mxu0 %v342
        %1127 = vmatprep.subr.bf16.mxu0 %v347
        %1128 = vmatpush1.bf16.msra.mxu0 %v346
        %1129 = vmatprep.subr.bf16.mxu0 %v351
        %1130 = vmatpush1.bf16.msra.mxu0 %v350
        %1131 = vmatprep.subr.bf16.mxu0 %v355
        %1132 = vmatpush1.bf16.msra.mxu0 %v354
        %1133 = vmatprep.subr.bf16.mxu0 %v359
        %1134 = vmatpush1.bf16.msra.mxu0 %v358
        %1135 = vmatprep.subr.bf16.mxu0 %v363
        %1136 = vmatpush1.bf16.msra.mxu0 %v362
        %1137 = vmatprep.subr.bf16.mxu0 %v367
        %1138 = vmatpush1.bf16.msra.mxu0 %v366
        %1139 = vmatprep.subr.bf16.mxu0 %v371
        %1140 = vmatpush1.bf16.msra.mxu0 %v370
        %1141 = vmatprep.subr.bf16.mxu0 0
        %1142 = vmatpush1.bf16.msra.mxu0 0
        %1143 = vmatprep.subr.bf16.mxu0 0
        %1144 = vmatpush1.bf16.msra.mxu0 0
        %1145 = vmatprep.subr.bf16.mxu0 0
        %1146 = vmatpush1.bf16.msra.mxu0 0
        %1147 = vmatprep.subr.bf16.mxu0 0
        %1148 = vmatpush1.bf16.msra.mxu0 0
        %1149 = vmatprep.subr.bf16.mxu0 0
        %1150 = vmatpush1.bf16.msra.mxu0 0
        %1151 = vmatprep.subr.bf16.mxu0 0
        %1152 = vmatpush1.bf16.msra.mxu0 0
        %1153 = vmatprep.subr.bf16.mxu0 0
        %1154 = vmatpush1.bf16.msra.mxu0 0
        %1155 = vmatprep.subr.bf16.mxu0 0
        %1156 = vmatpush1.bf16.msra.mxu0 0
        %1157 = vmatprep.mubr.bf16.mxu0 0
        %1158 = vmatmul.mubr.bf16.gmra.mrb[0].mxu0 %v1124
        %v1159 = vpop.f32.mrb[0].mxu0
        %v1160 = vadd.f32 0.0, %v1159
        %v1161 = vpop.f32.mrb[0].mxu0
        %v1162 = vadd.f32 0.0, %v1161
        %v1163 = vpop.f32.mrb[0].mxu0
        %v1164 = vpop.f32.mrb[0].mxu0
        %1165 = vdwg.mxu0
        %1166 = vmatprep.subr.bf16.mxu0 %v345
        %1167 = vmatpush1.bf16.msra.mxu0 %v344
        %1168 = vmatprep.subr.bf16.mxu0 %v349
        %1169 = vmatpush1.bf16.msra.mxu0 %v348
        %1170 = vmatprep.subr.bf16.mxu0 %v353
        %1171 = vmatpush1.bf16.msra.mxu0 %v352
        %1172 = vmatprep.subr.bf16.mxu0 %v357
        %1173 = vmatpush1.bf16.msra.mxu0 %v356
        %1174 = vmatprep.subr.bf16.mxu0 %v361
        %1175 = vmatpush1.bf16.msra.mxu0 %v360
        %1176 = vmatprep.subr.bf16.mxu0 %v365
        %1177 = vmatpush1.bf16.msra.mxu0 %v364
        %1178 = vmatprep.subr.bf16.mxu0 %v369
        %1179 = vmatpush1.bf16.msra.mxu0 %v368
        %1180 = vmatprep.subr.bf16.mxu0 %v373
        %1181 = vmatpush1.bf16.msra.mxu0 %v372
        %1182 = vmatprep.subr.bf16.mxu0 0
        %1183 = vmatpush1.bf16.msra.mxu0 0
        %1184 = vmatprep.subr.bf16.mxu0 0
        %1185 = vmatpush1.bf16.msra.mxu0 0
        %1186 = vmatprep.subr.bf16.mxu0 0
        %1187 = vmatpush1.bf16.msra.mxu0 0
        %1188 = vmatprep.subr.bf16.mxu0 0
        %1189 = vmatpush1.bf16.msra.mxu0 0
        %1190 = vmatprep.subr.bf16.mxu0 0
        %1191 = vmatpush1.bf16.msra.mxu0 0
        %1192 = vmatprep.subr.bf16.mxu0 0
        %1193 = vmatpush1.bf16.msra.mxu0 0
        %1194 = vmatprep.subr.bf16.mxu0 0
        %1195 = vmatpush1.bf16.msra.mxu0 0
        %1196 = vmatprep.subr.bf16.mxu0 0
        %1197 = vmatpush1.bf16.msra.mxu0 0
        %1198 = vmatprep.mubr.bf16.mxu0 0
        %1199 = vmatmul.mubr.bf16.gmra.mrb[0].mxu0 %v1124
        %v1200 = vpop.f32.mrb[0].mxu0
        %v1201 = vadd.f32 0.0, %v1200
        %v1202 = vpop.f32.mrb[0].mxu0
        %v1203 = vadd.f32 0.0, %v1202
        %v1204 = vpop.f32.mrb[0].mxu0
        %v1205 = vpop.f32.mrb[0].mxu0
        %1206 = vdwg.mxu0
        %v1207 = vadd.f32 %v1120, %v1160
        %v1208 = vadd.f32 %v1121, %v1162
        %v1209 = vadd.f32 %v1122, %v1201
        %v1210 = vadd.f32 %v1123, %v1203
        %v1211 = vxor.u32 %v1207, 2147483648
        %v1212 = vxor.u32 %v1208, 2147483648
        %v1213 = vxor.u32 %v1209, 2147483648
        %v1214 = vmul.f32 %v1211, 1.442695
        %v1215 = vpow.pop %v1214
        %v1216 = vmul.f32 %v1212, 1.442695
        %v1217 = vpow.pop %v1216
        %v1218 = vmul.f32 %v1213, 1.442695
        %v1219 = vpow.pop %v1218
        %v1220 = vadd.f32 %v1215, 1.0
        %v1221 = vadd.f32 %v1217, 1.0
        %v1222 = vadd.f32 %v1219, 1.0
        %v1223 = vrcp.pop %v1220
        %v1224 = vmul.f32 1.0, %v1223
        %v1225 = vrcp.pop %v1221
        %v1226 = vmul.f32 1.0, %v1225
        %v1227 = vrcp.pop %v1222
        %v1228 = vmul.f32 1.0, %v1227
        %v1229 = vtanh.pop %v1210
        %v1230 = vmul.f32 %v1226, %v1112
        %v1231 = vmul.f32 %v1224, %v1229
        %v1232 = vadd.f32 %v1230, %v1231
        %v1233 = vtanh.pop %v1232
        %v1234 = vmul.f32 %v1228, %v1233
        %s1235 = scalar_lea.vmem %s195, 48 [#allocation9]
        %1236 = vst [vmem:[%s1235] sm:$0xff] %v1234
        %s1237 = scalar_lea.vmem %s171, 112 [#allocation4]
        %v1238 = vld [vmem:[%s1237] sm:$0xff]
        %v1239 = vld [vmem:[%s1237 + $0x8] sm:$0xff]
        %v1240 = vunpack.c.l.bf16 %v1238
        %v1241 = vunpack.c.h.bf16 %v1238
        %v1242 = vunpack.c.l.bf16 %v1239
        %v1243 = vunpack.c.h.bf16 %v1239
        %v1244 = vpack.c.bf16 %v1234, %v1234
        %1245 = vmatprep.subr.bf16.mxu0 %v343
        %1246 = vmatpush1.bf16.msra.mxu0 %v342
        %1247 = vmatprep.subr.bf16.mxu0 %v347
        %1248 = vmatpush1.bf16.msra.mxu0 %v346
        %1249 = vmatprep.subr.bf16.mxu0 %v351
        %1250 = vmatpush1.bf16.msra.mxu0 %v350
        %1251 = vmatprep.subr.bf16.mxu0 %v355
        %1252 = vmatpush1.bf16.msra.mxu0 %v354
        %1253 = vmatprep.subr.bf16.mxu0 %v359
        %1254 = vmatpush1.bf16.msra.mxu0 %v358
        %1255 = vmatprep.subr.bf16.mxu0 %v363
        %1256 = vmatpush1.bf16.msra.mxu0 %v362
        %1257 = vmatprep.subr.bf16.mxu0 %v367
        %1258 = vmatpush1.bf16.msra.mxu0 %v366
        %1259 = vmatprep.subr.bf16.mxu0 %v371
        %1260 = vmatpush1.bf16.msra.mxu0 %v370
        %1261 = vmatprep.subr.bf16.mxu0 0
        %1262 = vmatpush1.bf16.msra.mxu0 0
        %1263 = vmatprep.subr.bf16.mxu0 0
        %1264 = vmatpush1.bf16.msra.mxu0 0
        %1265 = vmatprep.subr.bf16.mxu0 0
        %1266 = vmatpush1.bf16.msra.mxu0 0
        %1267 = vmatprep.subr.bf16.mxu0 0
        %1268 = vmatpush1.bf16.msra.mxu0 0
        %1269 = vmatprep.subr.bf16.mxu0 0
        %1270 = vmatpush1.bf16.msra.mxu0 0
        %1271 = vmatprep.subr.bf16.mxu0 0
        %1272 = vmatpush1.bf16.msra.mxu0 0
        %1273 = vmatprep.subr.bf16.mxu0 0
        %1274 = vmatpush1.bf16.msra.mxu0 0
        %1275 = vmatprep.subr.bf16.mxu0 0
        %1276 = vmatpush1.bf16.msra.mxu0 0
        %1277 = vmatprep.mubr.bf16.mxu0 0
        %1278 = vmatmul.mubr.bf16.gmra.mrb[0].mxu0 %v1244
        %v1279 = vpop.f32.mrb[0].mxu0
        %v1280 = vadd.f32 0.0, %v1279
        %v1281 = vpop.f32.mrb[0].mxu0
        %v1282 = vadd.f32 0.0, %v1281
        %v1283 = vpop.f32.mrb[0].mxu0
        %v1284 = vpop.f32.mrb[0].mxu0
        %1285 = vdwg.mxu0
        %1286 = vmatprep.subr.bf16.mxu0 %v345
        %1287 = vmatpush1.bf16.msra.mxu0 %v344
        %1288 = vmatprep.subr.bf16.mxu0 %v349
        %1289 = vmatpush1.bf16.msra.mxu0 %v348
        %1290 = vmatprep.subr.bf16.mxu0 %v353
        %1291 = vmatpush1.bf16.msra.mxu0 %v352
        %1292 = vmatprep.subr.bf16.mxu0 %v357
        %1293 = vmatpush1.bf16.msra.mxu0 %v356
        %1294 = vmatprep.subr.bf16.mxu0 %v361
        %1295 = vmatpush1.bf16.msra.mxu0 %v360
        %1296 = vmatprep.subr.bf16.mxu0 %v365
        %1297 = vmatpush1.bf16.msra.mxu0 %v364
        %1298 = vmatprep.subr.bf16.mxu0 %v369
        %1299 = vmatpush1.bf16.msra.mxu0 %v368
        %1300 = vmatprep.subr.bf16.mxu0 %v373
        %1301 = vmatpush1.bf16.msra.mxu0 %v372
        %1302 = vmatprep.subr.bf16.mxu0 0
        %1303 = vmatpush1.bf16.msra.mxu0 0
        %1304 = vmatprep.subr.bf16.mxu0 0
        %1305 = vmatpush1.bf16.msra.mxu0 0
        %1306 = vmatprep.subr.bf16.mxu0 0
        %1307 = vmatpush1.bf16.msra.mxu0 0
        %1308 = vmatprep.subr.bf16.mxu0 0
        %1309 = vmatpush1.bf16.msra.mxu0 0
        %1310 = vmatprep.subr.bf16.mxu0 0
        %1311 = vmatpush1.bf16.msra.mxu0 0
        %1312 = vmatprep.subr.bf16.mxu0 0
        %1313 = vmatpush1.bf16.msra.mxu0 0
        %1314 = vmatprep.subr.bf16.mxu0 0
        %1315 = vmatpush1.bf16.msra.mxu0 0
        %1316 = vmatprep.subr.bf16.mxu0 0
        %1317 = vmatpush1.bf16.msra.mxu0 0
        %1318 = vmatprep.mubr.bf16.mxu0 0
        %1319 = vmatmul.mubr.bf16.gmra.mrb[0].mxu0 %v1244
        %v1320 = vpop.f32.mrb[0].mxu0
        %v1321 = vadd.f32 0.0, %v1320
        %v1322 = vpop.f32.mrb[0].mxu0
        %v1323 = vadd.f32 0.0, %v1322
        %v1324 = vpop.f32.mrb[0].mxu0
        %v1325 = vpop.f32.mrb[0].mxu0
        %1326 = vdwg.mxu0
        %v1327 = vadd.f32 %v1240, %v1280
        %v1328 = vadd.f32 %v1241, %v1282
        %v1329 = vadd.f32 %v1242, %v1321
        %v1330 = vadd.f32 %v1243, %v1323
        %v1331 = vxor.u32 %v1327, 2147483648
        %v1332 = vxor.u32 %v1328, 2147483648
        %v1333 = vxor.u32 %v1329, 2147483648
        %v1334 = vmul.f32 %v1331, 1.442695
        %v1335 = vpow.pop %v1334
        %v1336 = vmul.f32 %v1332, 1.442695
        %v1337 = vpow.pop %v1336
        %v1338 = vmul.f32 %v1333, 1.442695
        %v1339 = vpow.pop %v1338
        %v1340 = vadd.f32 %v1335, 1.0
        %v1341 = vadd.f32 %v1337, 1.0
        %v1342 = vadd.f32 %v1339, 1.0
        %v1343 = vrcp.pop %v1340
        %v1344 = vmul.f32 1.0, %v1343
        %v1345 = vrcp.pop %v1341
        %v1346 = vmul.f32 1.0, %v1345
        %v1347 = vrcp.pop %v1342
        %v1348 = vmul.f32 1.0, %v1347
        %v1349 = vtanh.pop %v1330
        %v1350 = vmul.f32 %v1346, %v1232
        %v1351 = vmul.f32 %v1344, %v1349
        %v1352 = vadd.f32 %v1350, %v1351
        %v1353 = vtanh.pop %v1352
        %v1354 = vmul.f32 %v1348, %v1353
        %s1355 = scalar_lea.vmem %s195, 56 [#allocation9]
        %1356 = vst [vmem:[%s1355] sm:$0xff] %v1354
        %1357 = vst [vmem:[#allocation2] sm:$0xff] %v1354
        %1358 = vst [vmem:[#allocation3] sm:$0xff] %v1352
        %s1359 = sand.u32 %s91, 1
        %s1360 = scalar_lea.sflag [#allocation6], %s1359
        %s1361 = sand.u32 %s91, 1
        %s1362 = smul.addr %s1361, 64
        %s1363 = scalar_lea.vmem [#allocation9], %s1362
        // Predicated region
        $region41: #{lstm_forward.1} parent=27 // pred_check
          %p1364 = pneg %p101
        $region42: #{lstm_forward.1} parent=27 // pred_check_branch
          %1366 = sbr.rel (%p1364) target = $region44
        $region43: #{lstm_forward.1} parent=27 // pred_region
          %s1367 = smul.u32 8, %s25
          %s1369 = ssub.s32 1024, 1024
          %1370 = vsyncadd %s1360, %s1369
          %s1371 = sadd.s32 %s24, %s1367
          %s1372 = smul.addr %s1371, 128
          %s1373 = scalar_lea.hbm %s2, %s1372
          %s1374 = sshll.u32 %s1363, 4
          %s1375 = int_to_ptr.vmem [resolvable:$true] %s1374
          %1380 = dma.vmem_to_hbm [thread:$0]  %s1375, 1024, %s1373, %s1360, 128, 128, 8
        $region44: #{lstm_forward.1} parent=27 // pred_fallthru
          _
      $region28: #{lstm_forward.1} parent=5 // pred_fallthru
        _
      %p1381 = scmp.le.s32.totalorder 2, %s15
      // Predicated region
      $region45: #{lstm_forward.1} parent=5 // pred_check
        %p1382 = pneg %p1381
      $region46: #{lstm_forward.1} parent=5 // pred_check_branch
        %1384 = sbr.rel (%p1382) target = $region48
      $region47: #{lstm_forward.1} parent=5 // pred_region
        %s1385 = ssub.s32 %s15, 2
        // Predicated region
        $region49: #{lstm_forward.1} parent=47 // pred_check
          %p1386 = pneg %p107
        $region50: #{lstm_forward.1} parent=47 // pred_check_branch
          %1388 = sbr.rel (%p1386) target = $region52
        $region51: #{lstm_forward.1} parent=47 // pred_region
          %s1389 = sand.u32 %s92, 1
          %s1390 = scalar_lea.sflag [#allocation6], %s1389
          %s1391 = sand.u32 %s92, 1
          %s1392 = smul.addr %s1391, 64
          %s1393 = scalar_lea.vmem [#allocation9], %s1392
          %1394 = dma.done %s1390, 1024
        $region52: #{lstm_forward.1} parent=47 // pred_fallthru
          _
      $region48: #{lstm_forward.1} parent=5 // pred_fallthru
        _
    $region6: #{lstm_forward.1} parent=1 // loop_footer
      %s19 = sadd.s32 1, %s15
    $region7: #{lstm_forward.1} parent=1 // loop_footer_branch
      %14 = sbr.rel target = $region3
    $region8: #{lstm_forward.1} parent=1 // loop_exit
      _
    %1395 = vsyncpa [#allocation5], 1
    %s1396 = scalar_lea.sflag [#allocation5], 1
    %1397 = vsyncpa %s1396, 1
    %1398 = vsyncpa [#allocation8], 1
    %1399 = vsyncpa [#allocation6], 1
    %s1400 = scalar_lea.sflag [#allocation6], 1
    %1401 = vsyncpa %s1400, 1

</llo_original>
